<compile_context>
chip_gen: v6e
topology: v6e:2x2x1
jax: 0.10.0
libtpu: 0.0.40
codegen_flags: <defaults>
</compile_context>

<pallas_src>
import jax
import jax.numpy as jnp
from jax import lax
from jax.experimental import pallas as pl
from jax.experimental.pallas import tpu as pltpu


# ----------------------------------------------------------------------------
# Pallas kernel: fused (concat over links) -> 3x3 conv -> folded BN -> ReLU6
# ----------------------------------------------------------------------------
def _make_conv_kernel(n_links, link_cin, H, W, out_ch):
    """Build a kernel for one HarDBlock ConvLayer.

    Kernel ref order:
      x_ref_0..x_ref_{L-1}   : (1, H, W, C_l)  linked activations (one batch image)
      w_ref_0..w_ref_{L-1}   : (9*C_l, Cout)   bf16 weights, BN scale folded, HWIO order
      bias_ref               : (1, Cout)       f32 folded BN bias
      out_ref                : (1, H, W, Cout)
      patch_ref_0..{L-1}     : (H, W, 9*C_l)   f32 VMEM im2col scratch per link
    """

    def kernel(*refs):
        x_refs = refs[:n_links]
        w_refs = refs[n_links:2 * n_links]
        bias_ref = refs[2 * n_links]
        out_ref = refs[2 * n_links + 1]
        patch_refs = refs[2 * n_links + 2:]

        acc = None
        for l in range(n_links):
            c = link_cin[l]
            pbuf = patch_refs[l]
            xl = x_refs[l]

            # Zero-fill so the implicit pad=1 border taps contribute 0 (fused padding,
            # no host-side jnp.pad and no extra HBM traffic).
            pbuf[...] = jnp.zeros((H, W, 9 * c), jnp.float32)

            # Scatter the 9 shifted taps into the im2col buffer: channel block k=dy*3+dx
            # of pbuf[h, w, :] holds x[h+dy-1, w+dx-1, :] (zeros outside the image).
            for dy in range(3):
                for dx in range(3):
                    k = dy * 3 + dx
                    h0, h1 = max(0, 1 - dy), min(H, H + 1 - dy)
                    w0, w1 = max(0, 1 - dx), min(W, W + 1 - dx)
                    pbuf[h0:h1, w0:w1, k * c:(k + 1) * c] = xl[
                        0, h0 + dy - 1:h1 + dy - 1, w0 + dx - 1:w1 + dx - 1, :]

            # One well-shaped MXU matmul per link: (H*W, 9*C_l) @ (9*C_l, Cout),
            # bf16 operands, f32 accumulation.
            patch = pbuf[...].reshape(H * W, 9 * c).astype(jnp.bfloat16)
            contrib = jnp.dot(patch, w_refs[l][...],
                              preferred_element_type=jnp.float32)
            acc = contrib if acc is None else acc + contrib

        y = acc + bias_ref[...]                      # folded BN bias (f32)
        y = jnp.minimum(jnp.maximum(y, 0.0), 6.0)    # ReLU6
        out_ref[0] = y.reshape(H, W, out_ch).astype(out_ref.dtype)

    return kernel


def conv3x3_bn_relu6(xs, w_links, bias, out_ch):
    """Fused ConvLayer over the HarDBlock link inputs (concat fused into the kernel).

    xs:      list of NHWC activations [(B, H, W, C_l)] in link order.
    w_links: list of (9*C_l, out_ch) bf16 weights (BN scale folded in).
    bias:    (1, out_ch) f32 folded BN bias.
    """
    B, H, W, _ = xs[0].shape
    n_links = len(xs)
    link_cin = tuple(int(x.shape[-1]) for x in xs)

    kernel = _make_conv_kernel(n_links, link_cin, H, W, out_ch)

    in_specs = (
        [pl.BlockSpec((1, H, W, c), lambda b: (b, 0, 0, 0)) for c in link_cin]
        + [pl.BlockSpec(w.shape, lambda b: (0, 0)) for w in w_links]
        + [pl.BlockSpec(bias.shape, lambda b: (0, 0))]
    )
    scratch_shapes = [pltpu.VMEM((H, W, 9 * c), jnp.float32) for c in link_cin]

    return pl.pallas_call(
        kernel,
        out_shape=jax.ShapeDtypeStruct((B, H, W, out_ch), xs[0].dtype),
        grid=(B,),
        in_specs=in_specs,
        out_specs=pl.BlockSpec((1, H, W, out_ch), lambda b: (b, 0, 0, 0)),
        scratch_shapes=scratch_shapes,
        compiler_params=pltpu.CompilerParams(dimension_semantics=("parallel",)),
    )(*xs, *w_links, bias)


# ----------------------------------------------------------------------------
# HarDBlock structure (link computation is pure Python, identical to PyTorch)
# ----------------------------------------------------------------------------
def get_link(layer, base_ch, growth_rate, grmul):
    if layer == 0:
        return base_ch, 0, []
    out_channels = growth_rate
    link = []
    for i in range(10):
        dv = 2 ** i
        if layer % dv == 0:
            k = layer - dv
            link.append(k)
            if i > 0:
                out_channels *= grmul
    out_channels = int(int(out_channels + 1) / 2) * 2
    in_channels = 0
    for i in link:
        ch, _, _ = get_link(i, base_ch, growth_rate, grmul)
        in_channels += ch
    return out_channels, in_channels, link


class HarDBlockPallas:
    """JAX/Pallas port of HarDBlock (dwconv=False path: ConvLayer per layer)."""

    def __init__(self, in_channels, growth_rate, grmul, n_layers,
                 keepBase=False, key=None, eps=1e-5):
        self.keepBase = keepBase
        self.links = []
        self.layer_params = []   # (w_links_bf16, bias_row_f32, out_ch, link_ch)
        self.ref_params = []     # (w_hwio_folded_f32, bias_f32) for the pure-JAX reference
        self.out_channels = 0
        key = jax.random.PRNGKey(0) if key is None else key

        for i in range(n_layers):
            outch, inch, link = get_link(i + 1, in_channels, growth_rate, grmul)
            self.links.append(link)
            link_ch = [get_link(l, in_channels, growth_rate, grmul)[0] for l in link]
            assert sum(link_ch) == inch

            key, kw, kg, kb = jax.random.split(key, 4)
            # PyTorch conv weight is (Cout, Cin, 3, 3); generate then move to HWIO.
            w_oihw = jax.random.normal(kw, (outch, inch, 3, 3), jnp.float32) * 0.05
            w_hwio = jnp.transpose(w_oihw, (2, 3, 1, 0))          # (3, 3, Cin, Cout)
            # Eval-mode BN: gamma, beta, running mean/var folded to scale/bias.
            gamma = 1.0 + 0.1 * jax.random.normal(kg, (outch,), jnp.float32)
            beta = 0.1 * jax.random.normal(kb, (outch,), jnp.float32)
            running_mean = jnp.zeros((outch,), jnp.float32)
            running_var = jnp.ones((outch,), jnp.float32)
            scale = gamma / jnp.sqrt(running_var + eps)
            bias = beta - running_mean * scale

            # Fold BN scale into the conv weight; split per link along Cin (matches the
            # channel order of the PyTorch torch.cat over `link`); flatten to (9*C_l, Cout).
            w_folded = w_hwio * scale[None, None, None, :]
            w_links, off = [], 0
            for c in link_ch:
                w_l = w_folded[:, :, off:off + c, :].reshape(9 * c, outch)
                w_links.append(w_l.astype(jnp.bfloat16))
                off += c

            self.layer_params.append(
                (w_links, bias.reshape(1, outch).astype(jnp.float32), outch, tuple(link_ch)))
            self.ref_params.append((w_folded, bias))

            if i % 2 == 0 or i == n_layers - 1:
                self.out_channels += outch

    def __call__(self, x):
        # x: (B, H, W, Cin)  NHWC
        layers_ = [x]
        for layer_idx, (w_links, bias, outch, _) in enumerate(self.layer_params):
            link = self.links[layer_idx]
            xs = [layers_[i] for i in link]          # no host concat: fused in the kernel
            out = conv3x3_bn_relu6(xs, w_links, bias, outch)
            layers_.append(out)

        t = len(layers_)
        out_ = []
        for i in range(t):
            if (i == 0 and self.keepBase) or i == t - 1 or i % 2 == 1:
                out_.append(layers_[i])
        return jnp.concatenate(out_, axis=-1)


# ----------------------------------------------------------------------------
# Pure-JAX (XLA) reference for a correctness check
# ----------------------------------------------------------------------------
def reference_forward(block, x):
    layers_ = [x]
    for layer_idx, (w_hwio, bias) in enumerate(block.ref_params):
        link = block.links[layer_idx]
        tin = [layers_[i] for i in link]
        xin = jnp.concatenate(tin, axis=-1) if len(tin) > 1 else tin[0]
        y = lax.conv_general_dilated(
            xin, w_hwio, window_strides=(1, 1), padding="SAME",
            dimension_numbers=("NHWC", "HWIO", "NHWC"))
        y = jnp.clip(y + bias.reshape(1, 1, 1, -1), 0.0, 6.0)
        layers_.append(y)
    t = len(layers_)
    out_ = [layers_[i] for i in range(t)
            if (i == 0 and block.keepBase) or i == t - 1 or i % 2 == 1]
    return jnp.concatenate(out_, axis=-1)


# ----------------------------------------------------------------------------
# Demo
# ----------------------------------------------------------------------------
if __name__ == "__main__":
    B, H, W, Cin = 2, 16, 16, 16
    growth_rate, grmul, n_layers = 8, 1.7, 4

    key = jax.random.PRNGKey(0)
    kx, kp = jax.random.split(key)
    x = jax.random.normal(kx, (B, H, W, Cin), jnp.float32)  # NHWC

    block = HarDBlockPallas(Cin, growth_rate, grmul, n_layers, keepBase=False, key=kp)

    out = jax.block_until_ready(block(x))
    ref = jax.block_until_ready(reference_forward(block, x))

    expected_c = block.out_channels
    assert out.shape == (B, H, W, expected_c), (out.shape, expected_c)
    assert bool(jnp.all(jnp.isfinite(out)))
    max_err = float(jnp.max(jnp.abs(out - ref)))
    assert max_err < 0.1, f"kernel/reference mismatch: max abs err {max_err}"
    print("KERNEL_OK")
</pallas_src>

<mosaic_0001>
module attributes {stable_mosaic.version = 11 : i64} {
  func.func @kernel(%arg0: i32, %arg1: memref<1x16x16x16xf32, #tpu.memory_space<vmem>>, %arg2: memref<144x8xbf16, #tpu.memory_space<vmem>>, %arg3: memref<1x8xf32, #tpu.memory_space<vmem>>, %arg4: memref<1x16x16x8xf32, #tpu.memory_space<vmem>>, %arg5: memref<16x16x144xf32, #tpu.memory_space<vmem>>) attributes {dimension_semantics = [#tpu.dimension_semantics<parallel>], iteration_bounds = array<i64: 2>, scalar_prefetch = 0 : i64, scratch_operands = 1 : i64, tpu.core_type = #tpu.core_type<tc>, window_params = [{transform_indices = @transform_0, window_bounds = array<i64: 1, 16, 16, 16>}, {pipeline_mode = #tpu.pipeline_mode<synchronous>, transform_indices = @transform_1, window_bounds = array<i64: 144, 8>}, {pipeline_mode = #tpu.pipeline_mode<synchronous>, transform_indices = @transform_2, window_bounds = array<i64: 1, 8>}, {transform_indices = @transform_3, window_bounds = array<i64: 1, 16, 16, 8>}]} {
    %cst = arith.constant 0.000000e+00 : f32
    %0 = vector.broadcast %cst : f32 to vector<16x16x144xf32>
    %c0 = arith.constant 0 : index
    %c0_0 = arith.constant 0 : index
    %c0_1 = arith.constant 0 : index
    %1 = vector.load %arg5[%c0, %c0_0, %c0_1] : memref<16x16x144xf32, #tpu.memory_space<vmem>>, vector<16x16x144xf32>
    tpu.vector_store %arg5[%c0, %c0_0, %c0_1], %0 {strides = array<i32>} : memref<16x16x144xf32, #tpu.memory_space<vmem>>, vector<16x16x144xf32>,
    %c0_2 = arith.constant 0 : index
    %c0_3 = arith.constant 0 : index
    %c0_4 = arith.constant 0 : index
    %c0_5 = arith.constant 0 : index
    %2 = vector.load %arg1[%c0_2, %c0_3, %c0_4, %c0_5] : memref<1x16x16x16xf32, #tpu.memory_space<vmem>>, vector<1x15x15x16xf32>
    %3 = vector.shape_cast %2 : vector<1x15x15x16xf32> to vector<15x15x16xf32>
    %c1 = arith.constant 1 : index
    %c1_6 = arith.constant 1 : index
    %c0_7 = arith.constant 0 : index
    %4 = vector.load %arg5[%c1, %c1_6, %c0_7] : memref<16x16x144xf32, #tpu.memory_space<vmem>>, vector<15x15x16xf32>
    tpu.vector_store %arg5[%c1, %c1_6, %c0_7], %3 {strides = array<i32>} : memref<16x16x144xf32, #tpu.memory_space<vmem>>, vector<15x15x16xf32>,
    %c0_8 = arith.constant 0 : index
    %c0_9 = arith.constant 0 : index
    %c0_10 = arith.constant 0 : index
    %c0_11 = arith.constant 0 : index
    %5 = vector.load %arg1[%c0_8, %c0_9, %c0_10, %c0_11] : memref<1x16x16x16xf32, #tpu.memory_space<vmem>>, vector<1x15x16x16xf32>
    %6 = vector.shape_cast %5 : vector<1x15x16x16xf32> to vector<15x16x16xf32>
    %c1_12 = arith.constant 1 : index
    %c0_13 = arith.constant 0 : index
    %c16 = arith.constant 16 : index
    %7 = vector.load %arg5[%c1_12, %c0_13, %c16] : memref<16x16x144xf32, #tpu.memory_space<vmem>>, vector<15x16x16xf32>
    tpu.vector_store %arg5[%c1_12, %c0_13, %c16], %6 {strides = array<i32>} : memref<16x16x144xf32, #tpu.memory_space<vmem>>, vector<15x16x16xf32>,
    %c0_14 = arith.constant 0 : index
    %c0_15 = arith.constant 0 : index
    %c1_16 = arith.constant 1 : index
    %c0_17 = arith.constant 0 : index
    %8 = vector.load %arg1[%c0_14, %c0_15, %c1_16, %c0_17] : memref<1x16x16x16xf32, #tpu.memory_space<vmem>>, vector<1x15x15x16xf32>
    %9 = vector.shape_cast %8 : vector<1x15x15x16xf32> to vector<15x15x16xf32>
    %c1_18 = arith.constant 1 : index
    %c0_19 = arith.constant 0 : index
    %c32 = arith.constant 32 : index
    %10 = vector.load %arg5[%c1_18, %c0_19, %c32] : memref<16x16x144xf32, #tpu.memory_space<vmem>>, vector<15x15x16xf32>
    tpu.vector_store %arg5[%c1_18, %c0_19, %c32], %9 {strides = array<i32>} : memref<16x16x144xf32, #tpu.memory_space<vmem>>, vector<15x15x16xf32>,
    %c0_20 = arith.constant 0 : index
    %c0_21 = arith.constant 0 : index
    %c0_22 = arith.constant 0 : index
    %c0_23 = arith.constant 0 : index
    %11 = vector.load %arg1[%c0_20, %c0_21, %c0_22, %c0_23] : memref<1x16x16x16xf32, #tpu.memory_space<vmem>>, vector<1x16x15x16xf32>
    %12 = vector.shape_cast %11 : vector<1x16x15x16xf32> to vector<16x15x16xf32>
    %c0_24 = arith.constant 0 : index
    %c1_25 = arith.constant 1 : index
    %c48 = arith.constant 48 : index
    %13 = vector.load %arg5[%c0_24, %c1_25, %c48] : memref<16x16x144xf32, #tpu.memory_space<vmem>>, vector<16x15x16xf32>
    tpu.vector_store %arg5[%c0_24, %c1_25, %c48], %12 {strides = array<i32>} : memref<16x16x144xf32, #tpu.memory_space<vmem>>, vector<16x15x16xf32>,
    %c0_26 = arith.constant 0 : index
    %c0_27 = arith.constant 0 : index
    %c0_28 = arith.constant 0 : index
    %c0_29 = arith.constant 0 : index
    %14 = vector.load %arg1[%c0_26, %c0_27, %c0_28, %c0_29] : memref<1x16x16x16xf32, #tpu.memory_space<vmem>>, vector<1x16x16x16xf32>
    %15 = vector.shape_cast %14 : vector<1x16x16x16xf32> to vector<16x16x16xf32>
    %c0_30 = arith.constant 0 : index
    %c0_31 = arith.constant 0 : index
    %c64 = arith.constant 64 : index
    %16 = vector.load %arg5[%c0_30, %c0_31, %c64] : memref<16x16x144xf32, #tpu.memory_space<vmem>>, vector<16x16x16xf32>
    tpu.vector_store %arg5[%c0_30, %c0_31, %c64], %15 {strides = array<i32>} : memref<16x16x144xf32, #tpu.memory_space<vmem>>, vector<16x16x16xf32>,
    %c0_32 = arith.constant 0 : index
    %c0_33 = arith.constant 0 : index
    %c1_34 = arith.constant 1 : index
    %c0_35 = arith.constant 0 : index
    %17 = vector.load %arg1[%c0_32, %c0_33, %c1_34, %c0_35] : memref<1x16x16x16xf32, #tpu.memory_space<vmem>>, vector<1x16x15x16xf32>
    %18 = vector.shape_cast %17 : vector<1x16x15x16xf32> to vector<16x15x16xf32>
    %c0_36 = arith.constant 0 : index
    %c0_37 = arith.constant 0 : index
    %c80 = arith.constant 80 : index
    %19 = vector.load %arg5[%c0_36, %c0_37, %c80] : memref<16x16x144xf32, #tpu.memory_space<vmem>>, vector<16x15x16xf32>
    tpu.vector_store %arg5[%c0_36, %c0_37, %c80], %18 {strides = array<i32>} : memref<16x16x144xf32, #tpu.memory_space<vmem>>, vector<16x15x16xf32>,
    %c0_38 = arith.constant 0 : index
    %c1_39 = arith.constant 1 : index
    %c0_40 = arith.constant 0 : index
    %c0_41 = arith.constant 0 : index
    %20 = vector.load %arg1[%c0_38, %c1_39, %c0_40, %c0_41] : memref<1x16x16x16xf32, #tpu.memory_space<vmem>>, vector<1x15x15x16xf32>
    %21 = vector.shape_cast %20 : vector<1x15x15x16xf32> to vector<15x15x16xf32>
    %c0_42 = arith.constant 0 : index
    %c1_43 = arith.constant 1 : index
    %c96 = arith.constant 96 : index
    %22 = vector.load %arg5[%c0_42, %c1_43, %c96] : memref<16x16x144xf32, #tpu.memory_space<vmem>>, vector<15x15x16xf32>
    tpu.vector_store %arg5[%c0_42, %c1_43, %c96], %21 {strides = array<i32>} : memref<16x16x144xf32, #tpu.memory_space<vmem>>, vector<15x15x16xf32>,
    %c0_44 = arith.constant 0 : index
    %c1_45 = arith.constant 1 : index
    %c0_46 = arith.constant 0 : index
    %c0_47 = arith.constant 0 : index
    %23 = vector.load %arg1[%c0_44, %c1_45, %c0_46, %c0_47] : memref<1x16x16x16xf32, #tpu.memory_space<vmem>>, vector<1x15x16x16xf32>
    %24 = vector.shape_cast %23 : vector<1x15x16x16xf32> to vector<15x16x16xf32>
    %c0_48 = arith.constant 0 : index
    %c0_49 = arith.constant 0 : index
    %c112 = arith.constant 112 : index
    %25 = vector.load %arg5[%c0_48, %c0_49, %c112] : memref<16x16x144xf32, #tpu.memory_space<vmem>>, vector<15x16x16xf32>
    tpu.vector_store %arg5[%c0_48, %c0_49, %c112], %24 {strides = array<i32>} : memref<16x16x144xf32, #tpu.memory_space<vmem>>, vector<15x16x16xf32>,
    %c0_50 = arith.constant 0 : index
    %c1_51 = arith.constant 1 : index
    %c1_52 = arith.constant 1 : index
    %c0_53 = arith.constant 0 : index
    %26 = vector.load %arg1[%c0_50, %c1_51, %c1_52, %c0_53] : memref<1x16x16x16xf32, #tpu.memory_space<vmem>>, vector<1x15x15x16xf32>
    %27 = vector.shape_cast %26 : vector<1x15x15x16xf32> to vector<15x15x16xf32>
    %c0_54 = arith.constant 0 : index
    %c0_55 = arith.constant 0 : index
    %c128 = arith.constant 128 : index
    %28 = vector.load %arg5[%c0_54, %c0_55, %c128] : memref<16x16x144xf32, #tpu.memory_space<vmem>>, vector<15x15x16xf32>
    tpu.vector_store %arg5[%c0_54, %c0_55, %c128], %27 {strides = array<i32>} : memref<16x16x144xf32, #tpu.memory_space<vmem>>, vector<15x15x16xf32>,
    %c0_56 = arith.constant 0 : index
    %c0_57 = arith.constant 0 : index
    %c0_58 = arith.constant 0 : index
    %29 = vector.load %arg5[%c0_56, %c0_57, %c0_58] : memref<16x16x144xf32, #tpu.memory_space<vmem>>, vector<16x16x144xf32>
    %30 = vector.shape_cast %29 : vector<16x16x144xf32> to vector<256x144xf32>
    %31 = arith.truncf %30 : vector<256x144xf32> to vector<256x144xbf16>
    %c0_59 = arith.constant 0 : index
    %c0_60 = arith.constant 0 : index
    %32 = vector.load %arg2[%c0_59, %c0_60] : memref<144x8xbf16, #tpu.memory_space<vmem>>, vector<144x8xbf16>
    %cst_61 = arith.constant dense<0.000000e+00> : vector<256x8xf32>
    %33 = tpu.matmul %31, %32, %cst_61 {dimension_numbers = #tpu.dot_dimension_numbers<[1], [0], [0], [1], [0, 0, 1, 1], [], []>} : vector<256x144xbf16>, vector<144x8xbf16>, vector<256x8xf32> -> vector<256x8xf32>
    %c0_62 = arith.constant 0 : index
    %c0_63 = arith.constant 0 : index
    %34 = vector.load %arg3[%c0_62, %c0_63] : memref<1x8xf32, #tpu.memory_space<vmem>>, vector<1x8xf32>
    %35 = vector.broadcast %34 : vector<1x8xf32> to vector<256x8xf32>
    %36 = arith.addf %33, %35 : vector<256x8xf32>
    %cst_64 = arith.constant 0.000000e+00 : f32
    %37 = vector.broadcast %cst_64 : f32 to vector<256x8xf32>
    %38 = arith.maximumf %36, %37 : vector<256x8xf32>
    %cst_65 = arith.constant 6.000000e+00 : f32
    %39 = vector.broadcast %cst_65 : f32 to vector<256x8xf32>
    %40 = arith.minimumf %38, %39 : vector<256x8xf32>
    %41 = vector.shape_cast %40 : vector<256x8xf32> to vector<16x16x8xf32>
    %c0_66 = arith.constant 0 : index
    %c0_67 = arith.constant 0 : index
    %c0_68 = arith.constant 0 : index
    %c0_69 = arith.constant 0 : index
    %42 = vector.load %arg4[%c0_66, %c0_67, %c0_68, %c0_69] : memref<1x16x16x8xf32, #tpu.memory_space<vmem>>, vector<1x16x16x8xf32>
    %43 = vector.shape_cast %42 : vector<1x16x16x8xf32> to vector<16x16x8xf32>
    %44 = vector.shape_cast %41 : vector<16x16x8xf32> to vector<1x16x16x8xf32>
    tpu.vector_store %arg4[%c0_66, %c0_67, %c0_68, %c0_69], %44 {strides = array<i32>} : memref<1x16x16x8xf32, #tpu.memory_space<vmem>>, vector<1x16x16x8xf32>,
    return
  }
  func.func @transform_0(%arg0: i32) -> (i32, i32, i32, i32) {
    %c0_i32 = arith.constant 0 : i32
    %c0_i32_0 = arith.constant 0 : i32
    %c0_i32_1 = arith.constant 0 : i32
    %c0_i32_2 = arith.constant 0 : i32
    return %arg0, %c0_i32, %c0_i32_0, %c0_i32_1 : i32, i32, i32, i32
  }
  func.func @transform_1(%arg0: i32) -> (i32, i32) {
    %c0_i32 = arith.constant 0 : i32
    %c0_i32_0 = arith.constant 0 : i32
    %c0_i32_1 = arith.constant 0 : i32
    return %c0_i32, %c0_i32_0 : i32, i32
  }
  func.func @transform_2(%arg0: i32) -> (i32, i32) {
    %c0_i32 = arith.constant 0 : i32
    %c0_i32_0 = arith.constant 0 : i32
    %c0_i32_1 = arith.constant 0 : i32
    return %c0_i32, %c0_i32_0 : i32, i32
  }
  func.func @transform_3(%arg0: i32) -> (i32, i32, i32, i32) {
    %c0_i32 = arith.constant 0 : i32
    %c0_i32_0 = arith.constant 0 : i32
    %c0_i32_1 = arith.constant 0 : i32
    %c0_i32_2 = arith.constant 0 : i32
    return %arg0, %c0_i32, %c0_i32_0, %c0_i32_1 : i32, i32, i32, i32
  }
}

</mosaic_0001>

<llo_original>
// kernel: tpu_custom_call.1
$region0: #{tpu_custom_call.1}
  #allocation0 [shape = 'u32[]', space=smem, size = 0x4, offset = 0x4, fixed_abs, tag = 'smem constant byte address 0x4 - core index']
  #allocation1 [shape = 'u32[144,128]{1,0:T(1,128)}', space=vmem, size = 0x12000, scoped, tag = 'internal scratch']
  #allocation2 [shape = 'f32[16,16,144]{2,1,0:T(8,128)}', space=vmem, size = 0x40000, scoped, tag = 'scratch operand']
  %s0 = inlined_call_operand.hbm [shape: f32[2,16,16,16], index: 0, kind: input, shape index: {}]
  %s1 = inlined_call_operand.vmem [shape: bf16[144,8], index: 1, kind: input, shape index: {}]
  %s2 = inlined_call_operand.vmem [shape: f32[1,8], index: 2, kind: input, shape index: {}]
  %s3 = inlined_call_operand.vmem [shape: f32[2,16,16,8], index: 3, kind: output, shape index: {}]
  %s4 = sld [smem:[#allocation0]]
  $region49: #{tpu_custom_call.1} parent=0
    _
  %s6 = ssub.s32 1, %s4
  %s7 = scalar_select 0, %s6, %s4
  $region1: #{tpu_custom_call.1} parent=0
    #allocation3 [shape = 'u8[262144]{0}', space=vmem, size = 0x40000, scoped, tag = 'input window, operand 0']
    #allocation4 [shape = 's32[2]{0}', space=sflag, size = 0x8, scoped, tag = 'scoped memory for tpu_custom_call.1']
    %8 = vsyncpa [#allocation4], 0
    %s9 = scalar_lea.sflag [#allocation4], 1
    %10 = vsyncpa %s9, 0
    loop: start=0, step=1, limit=4
    $region2: #{tpu_custom_call.1} parent=1 // loop_pre_header
      _
    $region3: #{tpu_custom_call.1} parent=1 // loop_header
      %s12 = sphi 0, %s16
      %p13 = scmp.ge.s32.totalorder %s12, 4
      %s22 = sphi 0, %s24
      %s25 = sphi 0, %s22
      %s26 = sphi 0, %s25
      %s42 = sphi 0, %s26
      %s46 = sphi 0, %s46
      %s48 = sphi 0, %s46
      %s49 = sphi 0, %s48
      %s63 = sphi 0, %s49
      %s67 = sphi 0, %s67
      %s69 = sphi 0, %s67
      %s70 = sphi 0, %s69
      %s84 = sphi 0, %s70
      %s90 = sphi 0, %s92
      %s93 = sphi 0, %s90
      %s94 = sphi 0, %s93
      %s110 = sphi 0, %s94
    $region4: #{tpu_custom_call.1} parent=1 // loop_header_branch
      %15 = sbr.rel (%p13) target = $region8
    $region5: #{tpu_custom_call.1} parent=1 // loop_body
      %s17 = ssub.s32 %s12, 1
      %s18 = ssub.s32 %s12, 2
      %s19 = sadd.s32 %s12, 1
      %s20 = ssub.s32 %s12, %s19
      %p21 = scmp.eq.s32.totalorder %s20, 0
      %s23 = sadd.s32 %s22, 1
      %s24 = scalar_select %p21, %s22, %s23
      %p27 = pneg %p21
      %p28 = scmp.eq.s32.totalorder %s12, 1
      %p29 = por %p27, %p28
      %p30 = scmp.ne.s32.totalorder %s22, %s25
      %p31 = scmp.eq.s32.totalorder %s12, 0
      %p32 = por %p30, %p31
      %p33 = scmp.ne.s32.totalorder %s22, %s25
      %p34 = scmp.eq.s32.totalorder %s17, 1
      %p35 = por %p33, %p34
      %p36 = scmp.ne.s32.totalorder %s25, %s26
      %p37 = scmp.eq.s32.totalorder %s17, 0
      %p38 = por %p36, %p37
      %p39 = scmp.ne.s32.totalorder %s25, %s26
      %p40 = scmp.eq.s32.totalorder %s18, 1
      %p41 = por %p39, %p40
      %p43 = scmp.ne.s32.totalorder %s26, %s42
      %p44 = scmp.eq.s32.totalorder %s18, 0
      %p45 = por %p43, %p44
      %s47 = sadd.s32 %s46, 1
      %p50 = scmp.eq.s32.totalorder %s12, 1
      %p51 = scmp.ne.s32.totalorder %s46, %s48
      %p52 = scmp.eq.s32.totalorder %s12, 0
      %p53 = por %p51, %p52
      %p54 = scmp.ne.s32.totalorder %s46, %s48
      %p55 = scmp.eq.s32.totalorder %s17, 1
      %p56 = por %p54, %p55
      %p57 = scmp.ne.s32.totalorder %s48, %s49
      %p58 = scmp.eq.s32.totalorder %s17, 0
      %p59 = por %p57, %p58
      %p60 = scmp.ne.s32.totalorder %s48, %s49
      %p61 = scmp.eq.s32.totalorder %s18, 1
      %p62 = por %p60, %p61
      %p64 = scmp.ne.s32.totalorder %s49, %s63
      %p65 = scmp.eq.s32.totalorder %s18, 0
      %p66 = por %p64, %p65
      %s68 = sadd.s32 %s67, 1
      %p71 = scmp.eq.s32.totalorder %s12, 1
      %p72 = scmp.ne.s32.totalorder %s67, %s69
      %p73 = scmp.eq.s32.totalorder %s12, 0
      %p74 = por %p72, %p73
      %p75 = scmp.ne.s32.totalorder %s67, %s69
      %p76 = scmp.eq.s32.totalorder %s17, 1
      %p77 = por %p75, %p76
      %p78 = scmp.ne.s32.totalorder %s69, %s70
      %p79 = scmp.eq.s32.totalorder %s17, 0
      %p80 = por %p78, %p79
      %p81 = scmp.ne.s32.totalorder %s69, %s70
      %p82 = scmp.eq.s32.totalorder %s18, 1
      %p83 = por %p81, %p82
      %p85 = scmp.ne.s32.totalorder %s70, %s84
      %p86 = scmp.eq.s32.totalorder %s18, 0
      %p87 = por %p85, %p86
      %s88 = ssub.s32 %s12, %s19
      %p89 = scmp.eq.s32.totalorder %s88, 0
      %s91 = sadd.s32 %s90, 1
      %s92 = scalar_select %p89, %s90, %s91
      %p95 = pneg %p89
      %p96 = scmp.eq.s32.totalorder %s12, 1
      %p97 = por %p95, %p96
      %p98 = scmp.ne.s32.totalorder %s90, %s93
      %p99 = scmp.eq.s32.totalorder %s12, 0
      %p100 = por %p98, %p99
      %p101 = scmp.ne.s32.totalorder %s90, %s93
      %p102 = scmp.eq.s32.totalorder %s17, 1
      %p103 = por %p101, %p102
      %p104 = scmp.ne.s32.totalorder %s93, %s94
      %p105 = scmp.eq.s32.totalorder %s17, 0
      %p106 = por %p104, %p105
      %p107 = scmp.ne.s32.totalorder %s93, %s94
      %p108 = scmp.eq.s32.totalorder %s18, 1
      %p109 = por %p107, %p108
      %p111 = scmp.ne.s32.totalorder %s94, %s110
      %p112 = scmp.eq.s32.totalorder %s18, 0
      %p113 = por %p111, %p112
      %p114 = scmp.le.s32.totalorder 1, %s12
      %p115 = scmp.lt.s32.totalorder %s12, 3
      %p116 = pnand %p114, %p115
      %p117 = pneg %p116
      // Predicated region
      $region9: #{tpu_custom_call.1} parent=5 // pred_check
        _
      $region10: #{tpu_custom_call.1} parent=5 // pred_check_branch
        %119 = sbr.rel (%p116) target = $region12
      $region11: #{tpu_custom_call.1} parent=5 // pred_region
        %s120 = ssub.s32 %s12, 1
        // Predicated region
        $region13: #{tpu_custom_call.1} parent=11 // pred_check
          %p121 = pneg %p59
        $region14: #{tpu_custom_call.1} parent=11 // pred_check_branch
          %123 = sbr.rel (%p121) target = $region16
        $region15: #{tpu_custom_call.1} parent=11 // pred_region
          _
        $region16: #{tpu_custom_call.1} parent=11 // pred_fallthru
          _
        // Predicated region
        $region17: #{tpu_custom_call.1} parent=11 // pred_check
          %p124 = pneg %p80
        $region18: #{tpu_custom_call.1} parent=11 // pred_check_branch
          %126 = sbr.rel (%p124) target = $region20
        $region19: #{tpu_custom_call.1} parent=11 // pred_region
          _
        $region20: #{tpu_custom_call.1} parent=11 // pred_fallthru
          _
      $region12: #{tpu_custom_call.1} parent=5 // pred_fallthru
        _
      %p127 = scmp.lt.s32.totalorder %s12, 2
      // Predicated region
      $region21: #{tpu_custom_call.1} parent=5 // pred_check
        %p128 = pneg %p127
      $region22: #{tpu_custom_call.1} parent=5 // pred_check_branch
        %130 = sbr.rel (%p128) target = $region24
      $region23: #{tpu_custom_call.1} parent=5 // pred_region
        // Predicated region
        $region25: #{tpu_custom_call.1} parent=23 // pred_check
          %p131 = pneg %p32
        $region26: #{tpu_custom_call.1} parent=23 // pred_check_branch
          %133 = sbr.rel (%p131) target = $region28
        $region27: #{tpu_custom_call.1} parent=23 // pred_region
          %s134 = sand.u32 %s22, 1
          %s135 = scalar_lea.sflag [#allocation4], %s134
          %s136 = sand.u32 %s22, 1
          %s137 = smul.addr %s136, 256
          %s138 = scalar_lea.vmem [#allocation3], %s137
          %s140 = ssub.s32 4096, 4096
          %141 = vsyncadd %s135, %s140
          %s142 = smul.addr %s12, 32
          %s143 = smul.addr %s142, 128
          %s144 = scalar_lea.hbm %s0, %s143
          %s145 = sshll.u32 %s138, 4
          %s146 = int_to_ptr.vmem [resolvable:$true] %s145
          %151 = dma.hbm_to_vmem [thread:$0]  %s144, 4096, %s146, %s135, 128, 128, 8
        $region28: #{tpu_custom_call.1} parent=23 // pred_fallthru
          _
      $region24: #{tpu_custom_call.1} parent=5 // pred_fallthru
        _
      %p152 = scmp.le.s32.totalorder 1, %s12
      %p153 = scmp.lt.s32.totalorder %s12, 3
      %p154 = pnand %p152, %p153
      %p155 = pneg %p154
      // Predicated region
      $region29: #{tpu_custom_call.1} parent=5 // pred_check
        _
      $region30: #{tpu_custom_call.1} parent=5 // pred_check_branch
        %157 = sbr.rel (%p154) target = $region32
      $region31: #{tpu_custom_call.1} parent=5 // pred_region
        %s158 = ssub.s32 %s12, 1
        %s159 = sand.u32 %s25, 1
        %s160 = scalar_lea.sflag [#allocation4], %s159
        %s161 = sand.u32 %s25, 1
        %s162 = smul.addr %s161, 256
        %s163 = scalar_lea.vmem [#allocation3], %s162
        // Predicated region
        $region33: #{tpu_custom_call.1} parent=31 // pred_check
          %p164 = pneg %p38
        $region34: #{tpu_custom_call.1} parent=31 // pred_check_branch
          %166 = sbr.rel (%p164) target = $region36
        $region35: #{tpu_custom_call.1} parent=31 // pred_region
          %167 = dma.done %s160, 4096
        $region36: #{tpu_custom_call.1} parent=31 // pred_fallthru
          _
        %s168 = sand.u32 %s25, 1
        %s169 = scalar_lea.sflag [#allocation4], %s168
        %s170 = sand.u32 %s25, 1
        %s171 = smul.addr %s170, 256
        %s172 = scalar_lea.vmem [#allocation3], %s171
        %p173 = pneg %p38
        %p174 = pneg %p35
        %p175 = pneg %p59
        %p176 = pneg %p56
        %p177 = pneg %p80
        %p178 = pneg %p77
        %p179 = pneg %p106
        %p180 = pneg %p103
        %p181 = scmp.lt.s32.totalorder %s17, 1
        %s182 = scalar_select %p181, %s17, 1
        %s183 = smul.addr %s182, 32
        %s184 = smul.addr %s183, 8
        %s185 = scalar_lea.vmem %s3, %s184
        %p186 = scmp.lt.s32.totalorder %s17, 1
        %s187 = scalar_select %p186, %s17, 1
        %s188 = smul.addr %s187, 32
        %s189 = smul.addr %s188, 8
        %s190 = scalar_lea.vmem %s3, %s189
        %192 = vst [vmem:[#allocation2] sm:$0xff] 0.0
        %vm193 = vcmask 130048
        %194 = vst.msk [vmem:[#allocation2 + $0x8] sm:$0xff] %vm193, 0.0
        %195 = vst [vmem:[#allocation2 + $0x10] sm:$0xff] 0.0
        %196 = vst.msk [vmem:[#allocation2 + $0x18] sm:$0xff] %vm193, 0.0
        %197 = vst [vmem:[#allocation2 + $0x20] sm:$0xff] 0.0
        %198 = vst.msk [vmem:[#allocation2 + $0x28] sm:$0xff] %vm193, 0.0
        %199 = vst [vmem:[#allocation2 + $0x30] sm:$0xff] 0.0
        %200 = vst.msk [vmem:[#allocation2 + $0x38] sm:$0xff] %vm193, 0.0
        %201 = vst [vmem:[#allocation2 + $0x40] sm:$0xff] 0.0
        %202 = vst.msk [vmem:[#allocation2 + $0x48] sm:$0xff] %vm193, 0.0
        %203 = vst [vmem:[#allocation2 + $0x50] sm:$0xff] 0.0
        %204 = vst.msk [vmem:[#allocation2 + $0x58] sm:$0xff] %vm193, 0.0
        %205 = vst [vmem:[#allocation2 + $0x60] sm:$0xff] 0.0
        %206 = vst.msk [vmem:[#allocation2 + $0x68] sm:$0xff] %vm193, 0.0
        %207 = vst [vmem:[#allocation2 + $0x70] sm:$0xff] 0.0
        %208 = vst.msk [vmem:[#allocation2 + $0x78] sm:$0xff] %vm193, 0.0
        %209 = vst [vmem:[#allocation2 + $0x80] sm:$0xff] 0.0
        %210 = vst.msk [vmem:[#allocation2 + $0x88] sm:$0xff] %vm193, 0.0
        %211 = vst [vmem:[#allocation2 + $0x90] sm:$0xff] 0.0
        %212 = vst.msk [vmem:[#allocation2 + $0x98] sm:$0xff] %vm193, 0.0
        %213 = vst [vmem:[#allocation2 + $0xa0] sm:$0xff] 0.0
        %214 = vst.msk [vmem:[#allocation2 + $0xa8] sm:$0xff] %vm193, 0.0
        %215 = vst [vmem:[#allocation2 + $0xb0] sm:$0xff] 0.0
        %216 = vst.msk [vmem:[#allocation2 + $0xb8] sm:$0xff] %vm193, 0.0
        %217 = vst [vmem:[#allocation2 + $0xc0] sm:$0xff] 0.0
        %218 = vst.msk [vmem:[#allocation2 + $0xc8] sm:$0xff] %vm193, 0.0
        %219 = vst [vmem:[#allocation2 + $0xd0] sm:$0xff] 0.0
        %220 = vst.msk [vmem:[#allocation2 + $0xd8] sm:$0xff] %vm193, 0.0
        %221 = vst [vmem:[#allocation2 + $0xe0] sm:$0xff] 0.0
        %222 = vst.msk [vmem:[#allocation2 + $0xe8] sm:$0xff] %vm193, 0.0
        %223 = vst [vmem:[#allocation2 + $0xf0] sm:$0xff] 0.0
        %224 = vst.msk [vmem:[#allocation2 + $0xf8] sm:$0xff] %vm193, 0.0
        %225 = vst [vmem:[#allocation2 + $0x100] sm:$0xff] 0.0
        %226 = vst.msk [vmem:[#allocation2 + $0x108] sm:$0xff] %vm193, 0.0
        %227 = vst [vmem:[#allocation2 + $0x110] sm:$0xff] 0.0
        %228 = vst.msk [vmem:[#allocation2 + $0x118] sm:$0xff] %vm193, 0.0
        %229 = vst [vmem:[#allocation2 + $0x120] sm:$0xff] 0.0
        %230 = vst.msk [vmem:[#allocation2 + $0x128] sm:$0xff] %vm193, 0.0
        %231 = vst [vmem:[#allocation2 + $0x130] sm:$0xff] 0.0
        %232 = vst.msk [vmem:[#allocation2 + $0x138] sm:$0xff] %vm193, 0.0
        %233 = vst [vmem:[#allocation2 + $0x140] sm:$0xff] 0.0
        %234 = vst.msk [vmem:[#allocation2 + $0x148] sm:$0xff] %vm193, 0.0
        %235 = vst [vmem:[#allocation2 + $0x150] sm:$0xff] 0.0
        %236 = vst.msk [vmem:[#allocation2 + $0x158] sm:$0xff] %vm193, 0.0
        %237 = vst [vmem:[#allocation2 + $0x160] sm:$0xff] 0.0
        %238 = vst.msk [vmem:[#allocation2 + $0x168] sm:$0xff] %vm193, 0.0
        %239 = vst [vmem:[#allocation2 + $0x170] sm:$0xff] 0.0
        %240 = vst.msk [vmem:[#allocation2 + $0x178] sm:$0xff] %vm193, 0.0
        %241 = vst [vmem:[#allocation2 + $0x180] sm:$0xff] 0.0
        %242 = vst.msk [vmem:[#allocation2 + $0x188] sm:$0xff] %vm193, 0.0
        %243 = vst [vmem:[#allocation2 + $0x190] sm:$0xff] 0.0
        %244 = vst.msk [vmem:[#allocation2 + $0x198] sm:$0xff] %vm193, 0.0
        %245 = vst [vmem:[#allocation2 + $0x1a0] sm:$0xff] 0.0
        %246 = vst.msk [vmem:[#allocation2 + $0x1a8] sm:$0xff] %vm193, 0.0
        %247 = vst [vmem:[#allocation2 + $0x1b0] sm:$0xff] 0.0
        %248 = vst.msk [vmem:[#allocation2 + $0x1b8] sm:$0xff] %vm193, 0.0
        %249 = vst [vmem:[#allocation2 + $0x1c0] sm:$0xff] 0.0
        %250 = vst.msk [vmem:[#allocation2 + $0x1c8] sm:$0xff] %vm193, 0.0
        %251 = vst [vmem:[#allocation2 + $0x1d0] sm:$0xff] 0.0
        %252 = vst.msk [vmem:[#allocation2 + $0x1d8] sm:$0xff] %vm193, 0.0
        %253 = vst [vmem:[#allocation2 + $0x1e0] sm:$0xff] 0.0
        %254 = vst.msk [vmem:[#allocation2 + $0x1e8] sm:$0xff] %vm193, 0.0
        %255 = vst [vmem:[#allocation2 + $0x1f0] sm:$0xff] 0.0
        %256 = vst.msk [vmem:[#allocation2 + $0x1f8] sm:$0xff] %vm193, 0.0
        %v257 = vld [vmem:[%s163] sm:$0xff]
        %v258 = vld [vmem:[%s163 + $0x8] sm:$0x7f]
        %v259 = vld [vmem:[%s163 + $0x10] sm:$0xff]
        %v260 = vld [vmem:[%s163 + $0x18] sm:$0x7f]
        %v261 = vld [vmem:[%s163 + $0x20] sm:$0xff]
        %v262 = vld [vmem:[%s163 + $0x28] sm:$0x7f]
        %v263 = vld [vmem:[%s163 + $0x30] sm:$0xff]
        %v264 = vld [vmem:[%s163 + $0x38] sm:$0x7f]
        %v265 = vld [vmem:[%s163 + $0x40] sm:$0xff]
        %v266 = vld [vmem:[%s163 + $0x48] sm:$0x7f]
        %v267 = vld [vmem:[%s163 + $0x50] sm:$0xff]
        %v268 = vld [vmem:[%s163 + $0x58] sm:$0x7f]
        %v269 = vld [vmem:[%s163 + $0x60] sm:$0xff]
        %v270 = vld [vmem:[%s163 + $0x68] sm:$0x7f]
        %v271 = vld [vmem:[%s163 + $0x70] sm:$0xff]
        %v272 = vld [vmem:[%s163 + $0x78] sm:$0x7f]
        %v273 = vld [vmem:[%s163 + $0x80] sm:$0xff]
        %v274 = vld [vmem:[%s163 + $0x88] sm:$0x7f]
        %v275 = vld [vmem:[%s163 + $0x90] sm:$0xff]
        %v276 = vld [vmem:[%s163 + $0x98] sm:$0x7f]
        %v277 = vld [vmem:[%s163 + $0xa0] sm:$0xff]
        %v278 = vld [vmem:[%s163 + $0xa8] sm:$0x7f]
        %v279 = vld [vmem:[%s163 + $0xb0] sm:$0xff]
        %v280 = vld [vmem:[%s163 + $0xb8] sm:$0x7f]
        %v281 = vld [vmem:[%s163 + $0xc0] sm:$0xff]
        %v282 = vld [vmem:[%s163 + $0xc8] sm:$0x7f]
        %v283 = vld [vmem:[%s163 + $0xd0] sm:$0xff]
        %v284 = vld [vmem:[%s163 + $0xd8] sm:$0x7f]
        %v285 = vld [vmem:[%s163 + $0xe0] sm:$0xff]
        %v286 = vld [vmem:[%s163 + $0xe8] sm:$0x7f]
        %vm317 = vcmask 1040384
        %v318 = vrot.slane %v257, 7
        %v319 = vrot.slane %v258, 7
        %v320 = vsel %vm317, %v318, %v319
        %v321 = vrot.slane %v259, 7
        %v322 = vrot.slane %v260, 7
        %v323 = vsel %vm317, %v321, %v322
        %v324 = vrot.slane %v261, 7
        %v325 = vrot.slane %v262, 7
        %v326 = vsel %vm317, %v324, %v325
        %v327 = vrot.slane %v263, 7
        %v328 = vrot.slane %v264, 7
        %v329 = vsel %vm317, %v327, %v328
        %v330 = vrot.slane %v265, 7
        %v331 = vrot.slane %v266, 7
        %v332 = vsel %vm317, %v330, %v331
        %v333 = vrot.slane %v267, 7
        %v334 = vrot.slane %v268, 7
        %v335 = vsel %vm317, %v333, %v334
        %v336 = vrot.slane %v269, 7
        %v337 = vrot.slane %v270, 7
        %v338 = vsel %vm317, %v336, %v337
        %v339 = vrot.slane %v271, 7
        %v340 = vrot.slane %v272, 7
        %v341 = vsel %vm317, %v339, %v340
        %v342 = vrot.slane %v273, 7
        %v343 = vrot.slane %v274, 7
        %v344 = vsel %vm317, %v342, %v343
        %v345 = vrot.slane %v275, 7
        %v346 = vrot.slane %v276, 7
        %v347 = vsel %vm317, %v345, %v346
        %v348 = vrot.slane %v277, 7
        %v349 = vrot.slane %v278, 7
        %v350 = vsel %vm317, %v348, %v349
        %v351 = vrot.slane %v279, 7
        %v352 = vrot.slane %v280, 7
        %v353 = vsel %vm317, %v351, %v352
        %v354 = vrot.slane %v281, 7
        %v355 = vrot.slane %v282, 7
        %v356 = vsel %vm317, %v354, %v355
        %v357 = vrot.slane %v283, 7
        %v358 = vrot.slane %v284, 7
        %v359 = vsel %vm317, %v357, %v358
        %v360 = vrot.slane %v285, 7
        %v361 = vrot.slane %v286, 7
        %v362 = vsel %vm317, %v360, %v361
        %s393 = scalar_lea.vmem [#allocation2], 32
        %vm394 = vcmask 130049
        %395 = vst.msk [vmem:[%s393] sm:$0xfe] %vm394, %v318
        %396 = vst.msk [vmem:[%s393 + $0x10] sm:$0xff] %vm193, %v320
        %397 = vst.msk [vmem:[%s393 + $0x20] sm:$0xfe] %vm394, %v321
        %398 = vst.msk [vmem:[%s393 + $0x30] sm:$0xff] %vm193, %v323
        %399 = vst.msk [vmem:[%s393 + $0x40] sm:$0xfe] %vm394, %v324
        %400 = vst.msk [vmem:[%s393 + $0x50] sm:$0xff] %vm193, %v326
        %401 = vst.msk [vmem:[%s393 + $0x60] sm:$0xfe] %vm394, %v327
        %402 = vst.msk [vmem:[%s393 + $0x70] sm:$0xff] %vm193, %v329
        %403 = vst.msk [vmem:[%s393 + $0x80] sm:$0xfe] %vm394, %v330
        %404 = vst.msk [vmem:[%s393 + $0x90] sm:$0xff] %vm193, %v332
        %405 = vst.msk [vmem:[%s393 + $0xa0] sm:$0xfe] %vm394, %v333
        %406 = vst.msk [vmem:[%s393 + $0xb0] sm:$0xff] %vm193, %v335
        %407 = vst.msk [vmem:[%s393 + $0xc0] sm:$0xfe] %vm394, %v336
        %408 = vst.msk [vmem:[%s393 + $0xd0] sm:$0xff] %vm193, %v338
        %409 = vst.msk [vmem:[%s393 + $0xe0] sm:$0xfe] %vm394, %v339
        %410 = vst.msk [vmem:[%s393 + $0xf0] sm:$0xff] %vm193, %v341
        %411 = vst.msk [vmem:[%s393 + $0x100] sm:$0xfe] %vm394, %v342
        %412 = vst.msk [vmem:[%s393 + $0x110] sm:$0xff] %vm193, %v344
        %413 = vst.msk [vmem:[%s393 + $0x120] sm:$0xfe] %vm394, %v345
        %414 = vst.msk [vmem:[%s393 + $0x130] sm:$0xff] %vm193, %v347
        %415 = vst.msk [vmem:[%s393 + $0x140] sm:$0xfe] %vm394, %v348
        %416 = vst.msk [vmem:[%s393 + $0x150] sm:$0xff] %vm193, %v350
        %417 = vst.msk [vmem:[%s393 + $0x160] sm:$0xfe] %vm394, %v351
        %418 = vst.msk [vmem:[%s393 + $0x170] sm:$0xff] %vm193, %v353
        %419 = vst.msk [vmem:[%s393 + $0x180] sm:$0xfe] %vm394, %v354
        %420 = vst.msk [vmem:[%s393 + $0x190] sm:$0xff] %vm193, %v356
        %421 = vst.msk [vmem:[%s393 + $0x1a0] sm:$0xfe] %vm394, %v357
        %422 = vst.msk [vmem:[%s393 + $0x1b0] sm:$0xff] %vm193, %v359
        %423 = vst.msk [vmem:[%s393 + $0x1c0] sm:$0xfe] %vm394, %v360
        %424 = vst.msk [vmem:[%s393 + $0x1d0] sm:$0xff] %vm193, %v362
        %v425 = vld [vmem:[%s163] sm:$0xff]
        %v426 = vld [vmem:[%s163 + $0x8] sm:$0xff]
        %v427 = vld [vmem:[%s163 + $0x10] sm:$0xff]
        %v428 = vld [vmem:[%s163 + $0x18] sm:$0xff]
        %v429 = vld [vmem:[%s163 + $0x20] sm:$0xff]
        %v430 = vld [vmem:[%s163 + $0x28] sm:$0xff]
        %v431 = vld [vmem:[%s163 + $0x30] sm:$0xff]
        %v432 = vld [vmem:[%s163 + $0x38] sm:$0xff]
        %v433 = vld [vmem:[%s163 + $0x40] sm:$0xff]
        %v434 = vld [vmem:[%s163 + $0x48] sm:$0xff]
        %v435 = vld [vmem:[%s163 + $0x50] sm:$0xff]
        %v436 = vld [vmem:[%s163 + $0x58] sm:$0xff]
        %v437 = vld [vmem:[%s163 + $0x60] sm:$0xff]
        %v438 = vld [vmem:[%s163 + $0x68] sm:$0xff]
        %v439 = vld [vmem:[%s163 + $0x70] sm:$0xff]
        %v440 = vld [vmem:[%s163 + $0x78] sm:$0xff]
        %v441 = vld [vmem:[%s163 + $0x80] sm:$0xff]
        %v442 = vld [vmem:[%s163 + $0x88] sm:$0xff]
        %v443 = vld [vmem:[%s163 + $0x90] sm:$0xff]
        %v444 = vld [vmem:[%s163 + $0x98] sm:$0xff]
        %v445 = vld [vmem:[%s163 + $0xa0] sm:$0xff]
        %v446 = vld [vmem:[%s163 + $0xa8] sm:$0xff]
        %v447 = vld [vmem:[%s163 + $0xb0] sm:$0xff]
        %v448 = vld [vmem:[%s163 + $0xb8] sm:$0xff]
        %v449 = vld [vmem:[%s163 + $0xc0] sm:$0xff]
        %v450 = vld [vmem:[%s163 + $0xc8] sm:$0xff]
        %v451 = vld [vmem:[%s163 + $0xd0] sm:$0xff]
        %v452 = vld [vmem:[%s163 + $0xd8] sm:$0xff]
        %v453 = vld [vmem:[%s163 + $0xe0] sm:$0xff]
        %v454 = vld [vmem:[%s163 + $0xe8] sm:$0xff]
        %485 = vrot.lane.b32.xlu0 %v425, 16
        %v486 = vpop.permute.xlu0 %485
        %487 = vrot.lane.b32.xlu0 %v426, 16
        %v488 = vpop.permute.xlu0 %487
        %489 = vrot.lane.b32.xlu0 %v427, 16
        %v490 = vpop.permute.xlu0 %489
        %491 = vrot.lane.b32.xlu0 %v428, 16
        %v492 = vpop.permute.xlu0 %491
        %493 = vrot.lane.b32.xlu0 %v429, 16
        %v494 = vpop.permute.xlu0 %493
        %495 = vrot.lane.b32.xlu0 %v430, 16
        %v496 = vpop.permute.xlu0 %495
        %497 = vrot.lane.b32.xlu0 %v431, 16
        %v498 = vpop.permute.xlu0 %497
        %499 = vrot.lane.b32.xlu0 %v432, 16
        %v500 = vpop.permute.xlu0 %499
        %501 = vrot.lane.b32.xlu0 %v433, 16
        %v502 = vpop.permute.xlu0 %501
        %503 = vrot.lane.b32.xlu0 %v434, 16
        %v504 = vpop.permute.xlu0 %503
        %505 = vrot.lane.b32.xlu0 %v435, 16
        %v506 = vpop.permute.xlu0 %505
        %507 = vrot.lane.b32.xlu0 %v436, 16
        %v508 = vpop.permute.xlu0 %507
        %509 = vrot.lane.b32.xlu0 %v437, 16
        %v510 = vpop.permute.xlu0 %509
        %511 = vrot.lane.b32.xlu0 %v438, 16
        %v512 = vpop.permute.xlu0 %511
        %513 = vrot.lane.b32.xlu0 %v439, 16
        %v514 = vpop.permute.xlu0 %513
        %515 = vrot.lane.b32.xlu0 %v440, 16
        %v516 = vpop.permute.xlu0 %515
        %517 = vrot.lane.b32.xlu0 %v441, 16
        %v518 = vpop.permute.xlu0 %517
        %519 = vrot.lane.b32.xlu0 %v442, 16
        %v520 = vpop.permute.xlu0 %519
        %521 = vrot.lane.b32.xlu0 %v443, 16
        %v522 = vpop.permute.xlu0 %521
        %523 = vrot.lane.b32.xlu0 %v444, 16
        %v524 = vpop.permute.xlu0 %523
        %525 = vrot.lane.b32.xlu0 %v445, 16
        %v526 = vpop.permute.xlu0 %525
        %527 = vrot.lane.b32.xlu0 %v446, 16
        %v528 = vpop.permute.xlu0 %527
        %529 = vrot.lane.b32.xlu0 %v447, 16
        %v530 = vpop.permute.xlu0 %529
        %531 = vrot.lane.b32.xlu0 %v448, 16
        %v532 = vpop.permute.xlu0 %531
        %533 = vrot.lane.b32.xlu0 %v449, 16
        %v534 = vpop.permute.xlu0 %533
        %535 = vrot.lane.b32.xlu0 %v450, 16
        %v536 = vpop.permute.xlu0 %535
        %537 = vrot.lane.b32.xlu0 %v451, 16
        %v538 = vpop.permute.xlu0 %537
        %539 = vrot.lane.b32.xlu0 %v452, 16
        %v540 = vpop.permute.xlu0 %539
        %541 = vrot.lane.b32.xlu0 %v453, 16
        %v542 = vpop.permute.xlu0 %541
        %543 = vrot.lane.b32.xlu0 %v454, 16
        %v544 = vpop.permute.xlu0 %543
        %vm575 = vcmask 261248
        %576 = vst.msk [vmem:[%s393] sm:$0xff] %vm575, %v486
        %577 = vst.msk [vmem:[%s393 + $0x10] sm:$0xff] %vm575, %v488
        %578 = vst.msk [vmem:[%s393 + $0x20] sm:$0xff] %vm575, %v490
        %579 = vst.msk [vmem:[%s393 + $0x30] sm:$0xff] %vm575, %v492
        %580 = vst.msk [vmem:[%s393 + $0x40] sm:$0xff] %vm575, %v494
        %581 = vst.msk [vmem:[%s393 + $0x50] sm:$0xff] %vm575, %v496
        %582 = vst.msk [vmem:[%s393 + $0x60] sm:$0xff] %vm575, %v498
        %583 = vst.msk [vmem:[%s393 + $0x70] sm:$0xff] %vm575, %v500
        %584 = vst.msk [vmem:[%s393 + $0x80] sm:$0xff] %vm575, %v502
        %585 = vst.msk [vmem:[%s393 + $0x90] sm:$0xff] %vm575, %v504
        %586 = vst.msk [vmem:[%s393 + $0xa0] sm:$0xff] %vm575, %v506
        %587 = vst.msk [vmem:[%s393 + $0xb0] sm:$0xff] %vm575, %v508
        %588 = vst.msk [vmem:[%s393 + $0xc0] sm:$0xff] %vm575, %v510
        %589 = vst.msk [vmem:[%s393 + $0xd0] sm:$0xff] %vm575, %v512
        %590 = vst.msk [vmem:[%s393 + $0xe0] sm:$0xff] %vm575, %v514
        %591 = vst.msk [vmem:[%s393 + $0xf0] sm:$0xff] %vm575, %v516
        %592 = vst.msk [vmem:[%s393 + $0x100] sm:$0xff] %vm575, %v518
        %593 = vst.msk [vmem:[%s393 + $0x110] sm:$0xff] %vm575, %v520
        %594 = vst.msk [vmem:[%s393 + $0x120] sm:$0xff] %vm575, %v522
        %595 = vst.msk [vmem:[%s393 + $0x130] sm:$0xff] %vm575, %v524
        %596 = vst.msk [vmem:[%s393 + $0x140] sm:$0xff] %vm575, %v526
        %597 = vst.msk [vmem:[%s393 + $0x150] sm:$0xff] %vm575, %v528
        %598 = vst.msk [vmem:[%s393 + $0x160] sm:$0xff] %vm575, %v530
        %599 = vst.msk [vmem:[%s393 + $0x170] sm:$0xff] %vm575, %v532
        %600 = vst.msk [vmem:[%s393 + $0x180] sm:$0xff] %vm575, %v534
        %601 = vst.msk [vmem:[%s393 + $0x190] sm:$0xff] %vm575, %v536
        %602 = vst.msk [vmem:[%s393 + $0x1a0] sm:$0xff] %vm575, %v538
        %603 = vst.msk [vmem:[%s393 + $0x1b0] sm:$0xff] %vm575, %v540
        %604 = vst.msk [vmem:[%s393 + $0x1c0] sm:$0xff] %vm575, %v542
        %605 = vst.msk [vmem:[%s393 + $0x1d0] sm:$0xff] %vm575, %v544
        %v606 = vld [vmem:[%s163 + $0x1] sm:$0xff]
        %v607 = vld [vmem:[%s163 + $0x9] sm:$0x7f]
        %v608 = vld [vmem:[%s163 + $0x11] sm:$0xff]
        %v609 = vld [vmem:[%s163 + $0x19] sm:$0x7f]
        %v610 = vld [vmem:[%s163 + $0x21] sm:$0xff]
        %v611 = vld [vmem:[%s163 + $0x29] sm:$0x7f]
        %v612 = vld [vmem:[%s163 + $0x31] sm:$0xff]
        %v613 = vld [vmem:[%s163 + $0x39] sm:$0x7f]
        %v614 = vld [vmem:[%s163 + $0x41] sm:$0xff]
        %v615 = vld [vmem:[%s163 + $0x49] sm:$0x7f]
        %v616 = vld [vmem:[%s163 + $0x51] sm:$0xff]
        %v617 = vld [vmem:[%s163 + $0x59] sm:$0x7f]
        %v618 = vld [vmem:[%s163 + $0x61] sm:$0xff]
        %v619 = vld [vmem:[%s163 + $0x69] sm:$0x7f]
        %v620 = vld [vmem:[%s163 + $0x71] sm:$0xff]
        %v621 = vld [vmem:[%s163 + $0x79] sm:$0x7f]
        %v622 = vld [vmem:[%s163 + $0x81] sm:$0xff]
        %v623 = vld [vmem:[%s163 + $0x89] sm:$0x7f]
        %v624 = vld [vmem:[%s163 + $0x91] sm:$0xff]
        %v625 = vld [vmem:[%s163 + $0x99] sm:$0x7f]
        %v626 = vld [vmem:[%s163 + $0xa1] sm:$0xff]
        %v627 = vld [vmem:[%s163 + $0xa9] sm:$0x7f]
        %v628 = vld [vmem:[%s163 + $0xb1] sm:$0xff]
        %v629 = vld [vmem:[%s163 + $0xb9] sm:$0x7f]
        %v630 = vld [vmem:[%s163 + $0xc1] sm:$0xff]
        %v631 = vld [vmem:[%s163 + $0xc9] sm:$0x7f]
        %v632 = vld [vmem:[%s163 + $0xd1] sm:$0xff]
        %v633 = vld [vmem:[%s163 + $0xd9] sm:$0x7f]
        %v634 = vld [vmem:[%s163 + $0xe1] sm:$0xff]
        %v635 = vld [vmem:[%s163 + $0xe9] sm:$0x7f]
        %666 = vrot.lane.b32.xlu0 %v606, 32
        %v667 = vpop.permute.xlu0 %666
        %668 = vrot.lane.b32.xlu0 %v607, 32
        %v669 = vpop.permute.xlu0 %668
        %670 = vrot.lane.b32.xlu0 %v608, 32
        %v671 = vpop.permute.xlu0 %670
        %672 = vrot.lane.b32.xlu0 %v609, 32
        %v673 = vpop.permute.xlu0 %672
        %674 = vrot.lane.b32.xlu0 %v610, 32
        %v675 = vpop.permute.xlu0 %674
        %676 = vrot.lane.b32.xlu0 %v611, 32
        %v677 = vpop.permute.xlu0 %676
        %678 = vrot.lane.b32.xlu0 %v612, 32
        %v679 = vpop.permute.xlu0 %678
        %680 = vrot.lane.b32.xlu0 %v613, 32
        %v681 = vpop.permute.xlu0 %680
        %682 = vrot.lane.b32.xlu0 %v614, 32
        %v683 = vpop.permute.xlu0 %682
        %684 = vrot.lane.b32.xlu0 %v615, 32
        %v685 = vpop.permute.xlu0 %684
        %686 = vrot.lane.b32.xlu0 %v616, 32
        %v687 = vpop.permute.xlu0 %686
        %688 = vrot.lane.b32.xlu0 %v617, 32
        %v689 = vpop.permute.xlu0 %688
        %690 = vrot.lane.b32.xlu0 %v618, 32
        %v691 = vpop.permute.xlu0 %690
        %692 = vrot.lane.b32.xlu0 %v619, 32
        %v693 = vpop.permute.xlu0 %692
        %694 = vrot.lane.b32.xlu0 %v620, 32
        %v695 = vpop.permute.xlu0 %694
        %696 = vrot.lane.b32.xlu0 %v621, 32
        %v697 = vpop.permute.xlu0 %696
        %698 = vrot.lane.b32.xlu0 %v622, 32
        %v699 = vpop.permute.xlu0 %698
        %700 = vrot.lane.b32.xlu0 %v623, 32
        %v701 = vpop.permute.xlu0 %700
        %702 = vrot.lane.b32.xlu0 %v624, 32
        %v703 = vpop.permute.xlu0 %702
        %704 = vrot.lane.b32.xlu0 %v625, 32
        %v705 = vpop.permute.xlu0 %704
        %706 = vrot.lane.b32.xlu0 %v626, 32
        %v707 = vpop.permute.xlu0 %706
        %708 = vrot.lane.b32.xlu0 %v627, 32
        %v709 = vpop.permute.xlu0 %708
        %710 = vrot.lane.b32.xlu0 %v628, 32
        %v711 = vpop.permute.xlu0 %710
        %712 = vrot.lane.b32.xlu0 %v629, 32
        %v713 = vpop.permute.xlu0 %712
        %714 = vrot.lane.b32.xlu0 %v630, 32
        %v715 = vpop.permute.xlu0 %714
        %716 = vrot.lane.b32.xlu0 %v631, 32
        %v717 = vpop.permute.xlu0 %716
        %718 = vrot.lane.b32.xlu0 %v632, 32
        %v719 = vpop.permute.xlu0 %718
        %720 = vrot.lane.b32.xlu0 %v633, 32
        %v721 = vpop.permute.xlu0 %720
        %722 = vrot.lane.b32.xlu0 %v634, 32
        %v723 = vpop.permute.xlu0 %722
        %724 = vrot.lane.b32.xlu0 %v635, 32
        %v725 = vpop.permute.xlu0 %724
        %vm756 = vcmask 392448
        %757 = vst.msk [vmem:[%s393] sm:$0xff] %vm756, %v667
        %vm758 = vcmask 391424
        %759 = vst.msk [vmem:[%s393 + $0x10] sm:$0x7f] %vm758, %v669
        %760 = vst.msk [vmem:[%s393 + $0x20] sm:$0xff] %vm756, %v671
        %761 = vst.msk [vmem:[%s393 + $0x30] sm:$0x7f] %vm758, %v673
        %762 = vst.msk [vmem:[%s393 + $0x40] sm:$0xff] %vm756, %v675
        %763 = vst.msk [vmem:[%s393 + $0x50] sm:$0x7f] %vm758, %v677
        %764 = vst.msk [vmem:[%s393 + $0x60] sm:$0xff] %vm756, %v679
        %765 = vst.msk [vmem:[%s393 + $0x70] sm:$0x7f] %vm758, %v681
        %766 = vst.msk [vmem:[%s393 + $0x80] sm:$0xff] %vm756, %v683
        %767 = vst.msk [vmem:[%s393 + $0x90] sm:$0x7f] %vm758, %v685
        %768 = vst.msk [vmem:[%s393 + $0xa0] sm:$0xff] %vm756, %v687
        %769 = vst.msk [vmem:[%s393 + $0xb0] sm:$0x7f] %vm758, %v689
        %770 = vst.msk [vmem:[%s393 + $0xc0] sm:$0xff] %vm756, %v691
        %771 = vst.msk [vmem:[%s393 + $0xd0] sm:$0x7f] %vm758, %v693
        %772 = vst.msk [vmem:[%s393 + $0xe0] sm:$0xff] %vm756, %v695
        %773 = vst.msk [vmem:[%s393 + $0xf0] sm:$0x7f] %vm758, %v697
        %774 = vst.msk [vmem:[%s393 + $0x100] sm:$0xff] %vm756, %v699
        %775 = vst.msk [vmem:[%s393 + $0x110] sm:$0x7f] %vm758, %v701
        %776 = vst.msk [vmem:[%s393 + $0x120] sm:$0xff] %vm756, %v703
        %777 = vst.msk [vmem:[%s393 + $0x130] sm:$0x7f] %vm758, %v705
        %778 = vst.msk [vmem:[%s393 + $0x140] sm:$0xff] %vm756, %v707
        %779 = vst.msk [vmem:[%s393 + $0x150] sm:$0x7f] %vm758, %v709
        %780 = vst.msk [vmem:[%s393 + $0x160] sm:$0xff] %vm756, %v711
        %781 = vst.msk [vmem:[%s393 + $0x170] sm:$0x7f] %vm758, %v713
        %782 = vst.msk [vmem:[%s393 + $0x180] sm:$0xff] %vm756, %v715
        %783 = vst.msk [vmem:[%s393 + $0x190] sm:$0x7f] %vm758, %v717
        %784 = vst.msk [vmem:[%s393 + $0x1a0] sm:$0xff] %vm756, %v719
        %785 = vst.msk [vmem:[%s393 + $0x1b0] sm:$0x7f] %vm758, %v721
        %786 = vst.msk [vmem:[%s393 + $0x1c0] sm:$0xff] %vm756, %v723
        %787 = vst.msk [vmem:[%s393 + $0x1d0] sm:$0x7f] %vm758, %v725
        %v788 = vld [vmem:[%s163] sm:$0xff]
        %v789 = vld [vmem:[%s163 + $0x8] sm:$0x7f]
        %v790 = vld [vmem:[%s163 + $0x10] sm:$0xff]
        %v791 = vld [vmem:[%s163 + $0x18] sm:$0x7f]
        %v792 = vld [vmem:[%s163 + $0x20] sm:$0xff]
        %v793 = vld [vmem:[%s163 + $0x28] sm:$0x7f]
        %v794 = vld [vmem:[%s163 + $0x30] sm:$0xff]
        %v795 = vld [vmem:[%s163 + $0x38] sm:$0x7f]
        %v796 = vld [vmem:[%s163 + $0x40] sm:$0xff]
        %v797 = vld [vmem:[%s163 + $0x48] sm:$0x7f]
        %v798 = vld [vmem:[%s163 + $0x50] sm:$0xff]
        %v799 = vld [vmem:[%s163 + $0x58] sm:$0x7f]
        %v800 = vld [vmem:[%s163 + $0x60] sm:$0xff]
        %v801 = vld [vmem:[%s163 + $0x68] sm:$0x7f]
        %v802 = vld [vmem:[%s163 + $0x70] sm:$0xff]
        %v803 = vld [vmem:[%s163 + $0x78] sm:$0x7f]
        %v804 = vld [vmem:[%s163 + $0x80] sm:$0xff]
        %v805 = vld [vmem:[%s163 + $0x88] sm:$0x7f]
        %v806 = vld [vmem:[%s163 + $0x90] sm:$0xff]
        %v807 = vld [vmem:[%s163 + $0x98] sm:$0x7f]
        %v808 = vld [vmem:[%s163 + $0xa0] sm:$0xff]
        %v809 = vld [vmem:[%s163 + $0xa8] sm:$0x7f]
        %v810 = vld [vmem:[%s163 + $0xb0] sm:$0xff]
        %v811 = vld [vmem:[%s163 + $0xb8] sm:$0x7f]
        %v812 = vld [vmem:[%s163 + $0xc0] sm:$0xff]
        %v813 = vld [vmem:[%s163 + $0xc8] sm:$0x7f]
        %v814 = vld [vmem:[%s163 + $0xd0] sm:$0xff]
        %v815 = vld [vmem:[%s163 + $0xd8] sm:$0x7f]
        %v816 = vld [vmem:[%s163 + $0xe0] sm:$0xff]
        %v817 = vld [vmem:[%s163 + $0xe8] sm:$0x7f]
        %v818 = vld [vmem:[%s163 + $0xf0] sm:$0xff]
        %v819 = vld [vmem:[%s163 + $0xf8] sm:$0x7f]
        %v852 = vrot.slane %v788, 7
        %v853 = vrot.slane %v789, 7
        %v854 = vsel %vm317, %v852, %v853
        %v855 = vrot.slane %v790, 7
        %v856 = vrot.slane %v791, 7
        %v857 = vsel %vm317, %v855, %v856
        %v858 = vrot.slane %v792, 7
        %v859 = vrot.slane %v793, 7
        %v860 = vsel %vm317, %v858, %v859
        %v861 = vrot.slane %v794, 7
        %v862 = vrot.slane %v795, 7
        %v863 = vsel %vm317, %v861, %v862
        %v864 = vrot.slane %v796, 7
        %v865 = vrot.slane %v797, 7
        %v866 = vsel %vm317, %v864, %v865
        %v867 = vrot.slane %v798, 7
        %v868 = vrot.slane %v799, 7
        %v869 = vsel %vm317, %v867, %v868
        %v870 = vrot.slane %v800, 7
        %v871 = vrot.slane %v801, 7
        %v872 = vsel %vm317, %v870, %v871
        %v873 = vrot.slane %v802, 7
        %v874 = vrot.slane %v803, 7
        %v875 = vsel %vm317, %v873, %v874
        %v876 = vrot.slane %v804, 7
        %v877 = vrot.slane %v805, 7
        %v878 = vsel %vm317, %v876, %v877
        %v879 = vrot.slane %v806, 7
        %v880 = vrot.slane %v807, 7
        %v881 = vsel %vm317, %v879, %v880
        %v882 = vrot.slane %v808, 7
        %v883 = vrot.slane %v809, 7
        %v884 = vsel %vm317, %v882, %v883
        %v885 = vrot.slane %v810, 7
        %v886 = vrot.slane %v811, 7
        %v887 = vsel %vm317, %v885, %v886
        %v888 = vrot.slane %v812, 7
        %v889 = vrot.slane %v813, 7
        %v890 = vsel %vm317, %v888, %v889
        %v891 = vrot.slane %v814, 7
        %v892 = vrot.slane %v815, 7
        %v893 = vsel %vm317, %v891, %v892
        %v894 = vrot.slane %v816, 7
        %v895 = vrot.slane %v817, 7
        %v896 = vsel %vm317, %v894, %v895
        %v897 = vrot.slane %v818, 7
        %v898 = vrot.slane %v819, 7
        %v899 = vsel %vm317, %v897, %v898
        %900 = vrot.lane.b32.xlu0 %v852, 48
        %v901 = vpop.permute.xlu0 %900
        %902 = vrot.lane.b32.xlu0 %v854, 48
        %v903 = vpop.permute.xlu0 %902
        %904 = vrot.lane.b32.xlu0 %v855, 48
        %v905 = vpop.permute.xlu0 %904
        %906 = vrot.lane.b32.xlu0 %v857, 48
        %v907 = vpop.permute.xlu0 %906
        %908 = vrot.lane.b32.xlu0 %v858, 48
        %v909 = vpop.permute.xlu0 %908
        %910 = vrot.lane.b32.xlu0 %v860, 48
        %v911 = vpop.permute.xlu0 %910
        %912 = vrot.lane.b32.xlu0 %v861, 48
        %v913 = vpop.permute.xlu0 %912
        %914 = vrot.lane.b32.xlu0 %v863, 48
        %v915 = vpop.permute.xlu0 %914
        %916 = vrot.lane.b32.xlu0 %v864, 48
        %v917 = vpop.permute.xlu0 %916
        %918 = vrot.lane.b32.xlu0 %v866, 48
        %v919 = vpop.permute.xlu0 %918
        %920 = vrot.lane.b32.xlu0 %v867, 48
        %v921 = vpop.permute.xlu0 %920
        %922 = vrot.lane.b32.xlu0 %v869, 48
        %v923 = vpop.permute.xlu0 %922
        %924 = vrot.lane.b32.xlu0 %v870, 48
        %v925 = vpop.permute.xlu0 %924
        %926 = vrot.lane.b32.xlu0 %v872, 48
        %v927 = vpop.permute.xlu0 %926
        %928 = vrot.lane.b32.xlu0 %v873, 48
        %v929 = vpop.permute.xlu0 %928
        %930 = vrot.lane.b32.xlu0 %v875, 48
        %v931 = vpop.permute.xlu0 %930
        %932 = vrot.lane.b32.xlu0 %v876, 48
        %v933 = vpop.permute.xlu0 %932
        %934 = vrot.lane.b32.xlu0 %v878, 48
        %v935 = vpop.permute.xlu0 %934
        %936 = vrot.lane.b32.xlu0 %v879, 48
        %v937 = vpop.permute.xlu0 %936
        %938 = vrot.lane.b32.xlu0 %v881, 48
        %v939 = vpop.permute.xlu0 %938
        %940 = vrot.lane.b32.xlu0 %v882, 48
        %v941 = vpop.permute.xlu0 %940
        %942 = vrot.lane.b32.xlu0 %v884, 48
        %v943 = vpop.permute.xlu0 %942
        %944 = vrot.lane.b32.xlu0 %v885, 48
        %v945 = vpop.permute.xlu0 %944
        %946 = vrot.lane.b32.xlu0 %v887, 48
        %v947 = vpop.permute.xlu0 %946
        %948 = vrot.lane.b32.xlu0 %v888, 48
        %v949 = vpop.permute.xlu0 %948
        %950 = vrot.lane.b32.xlu0 %v890, 48
        %v951 = vpop.permute.xlu0 %950
        %952 = vrot.lane.b32.xlu0 %v891, 48
        %v953 = vpop.permute.xlu0 %952
        %954 = vrot.lane.b32.xlu0 %v893, 48
        %v955 = vpop.permute.xlu0 %954
        %956 = vrot.lane.b32.xlu0 %v894, 48
        %v957 = vpop.permute.xlu0 %956
        %958 = vrot.lane.b32.xlu0 %v896, 48
        %v959 = vpop.permute.xlu0 %958
        %960 = vrot.lane.b32.xlu0 %v897, 48
        %v961 = vpop.permute.xlu0 %960
        %962 = vrot.lane.b32.xlu0 %v899, 48
        %v963 = vpop.permute.xlu0 %962
        %vm996 = vcmask 523649
        %997 = vst.msk [vmem:[#allocation2] sm:$0xfe] %vm996, %v901
        %vm998 = vcmask 523648
        %999 = vst.msk [vmem:[#allocation2 + $0x10] sm:$0xff] %vm998, %v903
        %1000 = vst.msk [vmem:[#allocation2 + $0x20] sm:$0xfe] %vm996, %v905
        %1001 = vst.msk [vmem:[#allocation2 + $0x30] sm:$0xff] %vm998, %v907
        %1002 = vst.msk [vmem:[#allocation2 + $0x40] sm:$0xfe] %vm996, %v909
        %1003 = vst.msk [vmem:[#allocation2 + $0x50] sm:$0xff] %vm998, %v911
        %1004 = vst.msk [vmem:[#allocation2 + $0x60] sm:$0xfe] %vm996, %v913
        %1005 = vst.msk [vmem:[#allocation2 + $0x70] sm:$0xff] %vm998, %v915
        %1006 = vst.msk [vmem:[#allocation2 + $0x80] sm:$0xfe] %vm996, %v917
        %1007 = vst.msk [vmem:[#allocation2 + $0x90] sm:$0xff] %vm998, %v919
        %1008 = vst.msk [vmem:[#allocation2 + $0xa0] sm:$0xfe] %vm996, %v921
        %1009 = vst.msk [vmem:[#allocation2 + $0xb0] sm:$0xff] %vm998, %v923
        %1010 = vst.msk [vmem:[#allocation2 + $0xc0] sm:$0xfe] %vm996, %v925
        %1011 = vst.msk [vmem:[#allocation2 + $0xd0] sm:$0xff] %vm998, %v927
        %1012 = vst.msk [vmem:[#allocation2 + $0xe0] sm:$0xfe] %vm996, %v929
        %1013 = vst.msk [vmem:[#allocation2 + $0xf0] sm:$0xff] %vm998, %v931
        %1014 = vst.msk [vmem:[#allocation2 + $0x100] sm:$0xfe] %vm996, %v933
        %1015 = vst.msk [vmem:[#allocation2 + $0x110] sm:$0xff] %vm998, %v935
        %1016 = vst.msk [vmem:[#allocation2 + $0x120] sm:$0xfe] %vm996, %v937
        %1017 = vst.msk [vmem:[#allocation2 + $0x130] sm:$0xff] %vm998, %v939
        %1018 = vst.msk [vmem:[#allocation2 + $0x140] sm:$0xfe] %vm996, %v941
        %1019 = vst.msk [vmem:[#allocation2 + $0x150] sm:$0xff] %vm998, %v943
        %1020 = vst.msk [vmem:[#allocation2 + $0x160] sm:$0xfe] %vm996, %v945
        %1021 = vst.msk [vmem:[#allocation2 + $0x170] sm:$0xff] %vm998, %v947
        %1022 = vst.msk [vmem:[#allocation2 + $0x180] sm:$0xfe] %vm996, %v949
        %1023 = vst.msk [vmem:[#allocation2 + $0x190] sm:$0xff] %vm998, %v951
        %1024 = vst.msk [vmem:[#allocation2 + $0x1a0] sm:$0xfe] %vm996, %v953
        %1025 = vst.msk [vmem:[#allocation2 + $0x1b0] sm:$0xff] %vm998, %v955
        %1026 = vst.msk [vmem:[#allocation2 + $0x1c0] sm:$0xfe] %vm996, %v957
        %1027 = vst.msk [vmem:[#allocation2 + $0x1d0] sm:$0xff] %vm998, %v959
        %1028 = vst.msk [vmem:[#allocation2 + $0x1e0] sm:$0xfe] %vm996, %v961
        %1029 = vst.msk [vmem:[#allocation2 + $0x1f0] sm:$0xff] %vm998, %v963
        %v1030 = vld [vmem:[%s163] sm:$0xff]
        %v1031 = vld [vmem:[%s163 + $0x8] sm:$0xff]
        %v1032 = vld [vmem:[%s163 + $0x10] sm:$0xff]
        %v1033 = vld [vmem:[%s163 + $0x18] sm:$0xff]
        %v1034 = vld [vmem:[%s163 + $0x20] sm:$0xff]
        %v1035 = vld [vmem:[%s163 + $0x28] sm:$0xff]
        %v1036 = vld [vmem:[%s163 + $0x30] sm:$0xff]
        %v1037 = vld [vmem:[%s163 + $0x38] sm:$0xff]
        %v1038 = vld [vmem:[%s163 + $0x40] sm:$0xff]
        %v1039 = vld [vmem:[%s163 + $0x48] sm:$0xff]
        %v1040 = vld [vmem:[%s163 + $0x50] sm:$0xff]
        %v1041 = vld [vmem:[%s163 + $0x58] sm:$0xff]
        %v1042 = vld [vmem:[%s163 + $0x60] sm:$0xff]
        %v1043 = vld [vmem:[%s163 + $0x68] sm:$0xff]
        %v1044 = vld [vmem:[%s163 + $0x70] sm:$0xff]
        %v1045 = vld [vmem:[%s163 + $0x78] sm:$0xff]
        %v1046 = vld [vmem:[%s163 + $0x80] sm:$0xff]
        %v1047 = vld [vmem:[%s163 + $0x88] sm:$0xff]
        %v1048 = vld [vmem:[%s163 + $0x90] sm:$0xff]
        %v1049 = vld [vmem:[%s163 + $0x98] sm:$0xff]
        %v1050 = vld [vmem:[%s163 + $0xa0] sm:$0xff]
        %v1051 = vld [vmem:[%s163 + $0xa8] sm:$0xff]
        %v1052 = vld [vmem:[%s163 + $0xb0] sm:$0xff]
        %v1053 = vld [vmem:[%s163 + $0xb8] sm:$0xff]
        %v1054 = vld [vmem:[%s163 + $0xc0] sm:$0xff]
        %v1055 = vld [vmem:[%s163 + $0xc8] sm:$0xff]
        %v1056 = vld [vmem:[%s163 + $0xd0] sm:$0xff]
        %v1057 = vld [vmem:[%s163 + $0xd8] sm:$0xff]
        %v1058 = vld [vmem:[%s163 + $0xe0] sm:$0xff]
        %v1059 = vld [vmem:[%s163 + $0xe8] sm:$0xff]
        %v1060 = vld [vmem:[%s163 + $0xf0] sm:$0xff]
        %v1061 = vld [vmem:[%s163 + $0xf8] sm:$0xff]
        %1094 = vrot.lane.b32.xlu0 %v1030, 64
        %v1095 = vpop.permute.xlu0 %1094
        %1096 = vrot.lane.b32.xlu0 %v1031, 64
        %v1097 = vpop.permute.xlu0 %1096
        %1098 = vrot.lane.b32.xlu0 %v1032, 64
        %v1099 = vpop.permute.xlu0 %1098
        %1100 = vrot.lane.b32.xlu0 %v1033, 64
        %v1101 = vpop.permute.xlu0 %1100
        %1102 = vrot.lane.b32.xlu0 %v1034, 64
        %v1103 = vpop.permute.xlu0 %1102
        %1104 = vrot.lane.b32.xlu0 %v1035, 64
        %v1105 = vpop.permute.xlu0 %1104
        %1106 = vrot.lane.b32.xlu0 %v1036, 64
        %v1107 = vpop.permute.xlu0 %1106
        %1108 = vrot.lane.b32.xlu0 %v1037, 64
        %v1109 = vpop.permute.xlu0 %1108
        %1110 = vrot.lane.b32.xlu0 %v1038, 64
        %v1111 = vpop.permute.xlu0 %1110
        %1112 = vrot.lane.b32.xlu0 %v1039, 64
        %v1113 = vpop.permute.xlu0 %1112
        %1114 = vrot.lane.b32.xlu0 %v1040, 64
        %v1115 = vpop.permute.xlu0 %1114
        %1116 = vrot.lane.b32.xlu0 %v1041, 64
        %v1117 = vpop.permute.xlu0 %1116
        %1118 = vrot.lane.b32.xlu0 %v1042, 64
        %v1119 = vpop.permute.xlu0 %1118
        %1120 = vrot.lane.b32.xlu0 %v1043, 64
        %v1121 = vpop.permute.xlu0 %1120
        %1122 = vrot.lane.b32.xlu0 %v1044, 64
        %v1123 = vpop.permute.xlu0 %1122
        %1124 = vrot.lane.b32.xlu0 %v1045, 64
        %v1125 = vpop.permute.xlu0 %1124
        %1126 = vrot.lane.b32.xlu0 %v1046, 64
        %v1127 = vpop.permute.xlu0 %1126
        %1128 = vrot.lane.b32.xlu0 %v1047, 64
        %v1129 = vpop.permute.xlu0 %1128
        %1130 = vrot.lane.b32.xlu0 %v1048, 64
        %v1131 = vpop.permute.xlu0 %1130
        %1132 = vrot.lane.b32.xlu0 %v1049, 64
        %v1133 = vpop.permute.xlu0 %1132
        %1134 = vrot.lane.b32.xlu0 %v1050, 64
        %v1135 = vpop.permute.xlu0 %1134
        %1136 = vrot.lane.b32.xlu0 %v1051, 64
        %v1137 = vpop.permute.xlu0 %1136
        %1138 = vrot.lane.b32.xlu0 %v1052, 64
        %v1139 = vpop.permute.xlu0 %1138
        %1140 = vrot.lane.b32.xlu0 %v1053, 64
        %v1141 = vpop.permute.xlu0 %1140
        %1142 = vrot.lane.b32.xlu0 %v1054, 64
        %v1143 = vpop.permute.xlu0 %1142
        %1144 = vrot.lane.b32.xlu0 %v1055, 64
        %v1145 = vpop.permute.xlu0 %1144
        %1146 = vrot.lane.b32.xlu0 %v1056, 64
        %v1147 = vpop.permute.xlu0 %1146
        %1148 = vrot.lane.b32.xlu0 %v1057, 64
        %v1149 = vpop.permute.xlu0 %1148
        %1150 = vrot.lane.b32.xlu0 %v1058, 64
        %v1151 = vpop.permute.xlu0 %1150
        %1152 = vrot.lane.b32.xlu0 %v1059, 64
        %v1153 = vpop.permute.xlu0 %1152
        %1154 = vrot.lane.b32.xlu0 %v1060, 64
        %v1155 = vpop.permute.xlu0 %1154
        %1156 = vrot.lane.b32.xlu0 %v1061, 64
        %v1157 = vpop.permute.xlu0 %1156
        %vm1190 = vcmask 654848
        %1191 = vst.msk [vmem:[#allocation2] sm:$0xff] %vm1190, %v1095
        %1192 = vst.msk [vmem:[#allocation2 + $0x10] sm:$0xff] %vm1190, %v1097
        %1193 = vst.msk [vmem:[#allocation2 + $0x20] sm:$0xff] %vm1190, %v1099
        %1194 = vst.msk [vmem:[#allocation2 + $0x30] sm:$0xff] %vm1190, %v1101
        %1195 = vst.msk [vmem:[#allocation2 + $0x40] sm:$0xff] %vm1190, %v1103
        %1196 = vst.msk [vmem:[#allocation2 + $0x50] sm:$0xff] %vm1190, %v1105
        %1197 = vst.msk [vmem:[#allocation2 + $0x60] sm:$0xff] %vm1190, %v1107
        %1198 = vst.msk [vmem:[#allocation2 + $0x70] sm:$0xff] %vm1190, %v1109
        %1199 = vst.msk [vmem:[#allocation2 + $0x80] sm:$0xff] %vm1190, %v1111
        %1200 = vst.msk [vmem:[#allocation2 + $0x90] sm:$0xff] %vm1190, %v1113
        %1201 = vst.msk [vmem:[#allocation2 + $0xa0] sm:$0xff] %vm1190, %v1115
        %1202 = vst.msk [vmem:[#allocation2 + $0xb0] sm:$0xff] %vm1190, %v1117
        %1203 = vst.msk [vmem:[#allocation2 + $0xc0] sm:$0xff] %vm1190, %v1119
        %1204 = vst.msk [vmem:[#allocation2 + $0xd0] sm:$0xff] %vm1190, %v1121
        %1205 = vst.msk [vmem:[#allocation2 + $0xe0] sm:$0xff] %vm1190, %v1123
        %1206 = vst.msk [vmem:[#allocation2 + $0xf0] sm:$0xff] %vm1190, %v1125
        %1207 = vst.msk [vmem:[#allocation2 + $0x100] sm:$0xff] %vm1190, %v1127
        %1208 = vst.msk [vmem:[#allocation2 + $0x110] sm:$0xff] %vm1190, %v1129
        %1209 = vst.msk [vmem:[#allocation2 + $0x120] sm:$0xff] %vm1190, %v1131
        %1210 = vst.msk [vmem:[#allocation2 + $0x130] sm:$0xff] %vm1190, %v1133
        %1211 = vst.msk [vmem:[#allocation2 + $0x140] sm:$0xff] %vm1190, %v1135
        %1212 = vst.msk [vmem:[#allocation2 + $0x150] sm:$0xff] %vm1190, %v1137
        %1213 = vst.msk [vmem:[#allocation2 + $0x160] sm:$0xff] %vm1190, %v1139
        %1214 = vst.msk [vmem:[#allocation2 + $0x170] sm:$0xff] %vm1190, %v1141
        %1215 = vst.msk [vmem:[#allocation2 + $0x180] sm:$0xff] %vm1190, %v1143
        %1216 = vst.msk [vmem:[#allocation2 + $0x190] sm:$0xff] %vm1190, %v1145
        %1217 = vst.msk [vmem:[#allocation2 + $0x1a0] sm:$0xff] %vm1190, %v1147
        %1218 = vst.msk [vmem:[#allocation2 + $0x1b0] sm:$0xff] %vm1190, %v1149
        %1219 = vst.msk [vmem:[#allocation2 + $0x1c0] sm:$0xff] %vm1190, %v1151
        %1220 = vst.msk [vmem:[#allocation2 + $0x1d0] sm:$0xff] %vm1190, %v1153
        %1221 = vst.msk [vmem:[#allocation2 + $0x1e0] sm:$0xff] %vm1190, %v1155
        %1222 = vst.msk [vmem:[#allocation2 + $0x1f0] sm:$0xff] %vm1190, %v1157
        %v1223 = vld [vmem:[%s163 + $0x1] sm:$0xff]
        %v1224 = vld [vmem:[%s163 + $0x9] sm:$0x7f]
        %v1225 = vld [vmem:[%s163 + $0x11] sm:$0xff]
        %v1226 = vld [vmem:[%s163 + $0x19] sm:$0x7f]
        %v1227 = vld [vmem:[%s163 + $0x21] sm:$0xff]
        %v1228 = vld [vmem:[%s163 + $0x29] sm:$0x7f]
        %v1229 = vld [vmem:[%s163 + $0x31] sm:$0xff]
        %v1230 = vld [vmem:[%s163 + $0x39] sm:$0x7f]
        %v1231 = vld [vmem:[%s163 + $0x41] sm:$0xff]
        %v1232 = vld [vmem:[%s163 + $0x49] sm:$0x7f]
        %v1233 = vld [vmem:[%s163 + $0x51] sm:$0xff]
        %v1234 = vld [vmem:[%s163 + $0x59] sm:$0x7f]
        %v1235 = vld [vmem:[%s163 + $0x61] sm:$0xff]
        %v1236 = vld [vmem:[%s163 + $0x69] sm:$0x7f]
        %v1237 = vld [vmem:[%s163 + $0x71] sm:$0xff]
        %v1238 = vld [vmem:[%s163 + $0x79] sm:$0x7f]
        %v1239 = vld [vmem:[%s163 + $0x81] sm:$0xff]
        %v1240 = vld [vmem:[%s163 + $0x89] sm:$0x7f]
        %v1241 = vld [vmem:[%s163 + $0x91] sm:$0xff]
        %v1242 = vld [vmem:[%s163 + $0x99] sm:$0x7f]
        %v1243 = vld [vmem:[%s163 + $0xa1] sm:$0xff]
        %v1244 = vld [vmem:[%s163 + $0xa9] sm:$0x7f]
        %v1245 = vld [vmem:[%s163 + $0xb1] sm:$0xff]
        %v1246 = vld [vmem:[%s163 + $0xb9] sm:$0x7f]
        %v1247 = vld [vmem:[%s163 + $0xc1] sm:$0xff]
        %v1248 = vld [vmem:[%s163 + $0xc9] sm:$0x7f]
        %v1249 = vld [vmem:[%s163 + $0xd1] sm:$0xff]
        %v1250 = vld [vmem:[%s163 + $0xd9] sm:$0x7f]
        %v1251 = vld [vmem:[%s163 + $0xe1] sm:$0xff]
        %v1252 = vld [vmem:[%s163 + $0xe9] sm:$0x7f]
        %v1253 = vld [vmem:[%s163 + $0xf1] sm:$0xff]
        %v1254 = vld [vmem:[%s163 + $0xf9] sm:$0x7f]
        %1287 = vrot.lane.b32.xlu0 %v1223, 80
        %v1288 = vpop.permute.xlu0 %1287
        %1289 = vrot.lane.b32.xlu0 %v1224, 80
        %v1290 = vpop.permute.xlu0 %1289
        %1291 = vrot.lane.b32.xlu0 %v1225, 80
        %v1292 = vpop.permute.xlu0 %1291
        %1293 = vrot.lane.b32.xlu0 %v1226, 80
        %v1294 = vpop.permute.xlu0 %1293
        %1295 = vrot.lane.b32.xlu0 %v1227, 80
        %v1296 = vpop.permute.xlu0 %1295
        %1297 = vrot.lane.b32.xlu0 %v1228, 80
        %v1298 = vpop.permute.xlu0 %1297
        %1299 = vrot.lane.b32.xlu0 %v1229, 80
        %v1300 = vpop.permute.xlu0 %1299
        %1301 = vrot.lane.b32.xlu0 %v1230, 80
        %v1302 = vpop.permute.xlu0 %1301
        %1303 = vrot.lane.b32.xlu0 %v1231, 80
        %v1304 = vpop.permute.xlu0 %1303
        %1305 = vrot.lane.b32.xlu0 %v1232, 80
        %v1306 = vpop.permute.xlu0 %1305
        %1307 = vrot.lane.b32.xlu0 %v1233, 80
        %v1308 = vpop.permute.xlu0 %1307
        %1309 = vrot.lane.b32.xlu0 %v1234, 80
        %v1310 = vpop.permute.xlu0 %1309
        %1311 = vrot.lane.b32.xlu0 %v1235, 80
        %v1312 = vpop.permute.xlu0 %1311
        %1313 = vrot.lane.b32.xlu0 %v1236, 80
        %v1314 = vpop.permute.xlu0 %1313
        %1315 = vrot.lane.b32.xlu0 %v1237, 80
        %v1316 = vpop.permute.xlu0 %1315
        %1317 = vrot.lane.b32.xlu0 %v1238, 80
        %v1318 = vpop.permute.xlu0 %1317
        %1319 = vrot.lane.b32.xlu0 %v1239, 80
        %v1320 = vpop.permute.xlu0 %1319
        %1321 = vrot.lane.b32.xlu0 %v1240, 80
        %v1322 = vpop.permute.xlu0 %1321
        %1323 = vrot.lane.b32.xlu0 %v1241, 80
        %v1324 = vpop.permute.xlu0 %1323
        %1325 = vrot.lane.b32.xlu0 %v1242, 80
        %v1326 = vpop.permute.xlu0 %1325
        %1327 = vrot.lane.b32.xlu0 %v1243, 80
        %v1328 = vpop.permute.xlu0 %1327
        %1329 = vrot.lane.b32.xlu0 %v1244, 80
        %v1330 = vpop.permute.xlu0 %1329
        %1331 = vrot.lane.b32.xlu0 %v1245, 80
        %v1332 = vpop.permute.xlu0 %1331
        %1333 = vrot.lane.b32.xlu0 %v1246, 80
        %v1334 = vpop.permute.xlu0 %1333
        %1335 = vrot.lane.b32.xlu0 %v1247, 80
        %v1336 = vpop.permute.xlu0 %1335
        %1337 = vrot.lane.b32.xlu0 %v1248, 80
        %v1338 = vpop.permute.xlu0 %1337
        %1339 = vrot.lane.b32.xlu0 %v1249, 80
        %v1340 = vpop.permute.xlu0 %1339
        %1341 = vrot.lane.b32.xlu0 %v1250, 80
        %v1342 = vpop.permute.xlu0 %1341
        %1343 = vrot.lane.b32.xlu0 %v1251, 80
        %v1344 = vpop.permute.xlu0 %1343
        %1345 = vrot.lane.b32.xlu0 %v1252, 80
        %v1346 = vpop.permute.xlu0 %1345
        %1347 = vrot.lane.b32.xlu0 %v1253, 80
        %v1348 = vpop.permute.xlu0 %1347
        %1349 = vrot.lane.b32.xlu0 %v1254, 80
        %v1350 = vpop.permute.xlu0 %1349
        %vm1383 = vcmask 786048
        %1384 = vst.msk [vmem:[#allocation2] sm:$0xff] %vm1383, %v1288
        %vm1385 = vcmask 785024
        %1386 = vst.msk [vmem:[#allocation2 + $0x10] sm:$0x7f] %vm1385, %v1290
        %1387 = vst.msk [vmem:[#allocation2 + $0x20] sm:$0xff] %vm1383, %v1292
        %1388 = vst.msk [vmem:[#allocation2 + $0x30] sm:$0x7f] %vm1385, %v1294
        %1389 = vst.msk [vmem:[#allocation2 + $0x40] sm:$0xff] %vm1383, %v1296
        %1390 = vst.msk [vmem:[#allocation2 + $0x50] sm:$0x7f] %vm1385, %v1298
        %1391 = vst.msk [vmem:[#allocation2 + $0x60] sm:$0xff] %vm1383, %v1300
        %1392 = vst.msk [vmem:[#allocation2 + $0x70] sm:$0x7f] %vm1385, %v1302
        %1393 = vst.msk [vmem:[#allocation2 + $0x80] sm:$0xff] %vm1383, %v1304
        %1394 = vst.msk [vmem:[#allocation2 + $0x90] sm:$0x7f] %vm1385, %v1306
        %1395 = vst.msk [vmem:[#allocation2 + $0xa0] sm:$0xff] %vm1383, %v1308
        %1396 = vst.msk [vmem:[#allocation2 + $0xb0] sm:$0x7f] %vm1385, %v1310
        %1397 = vst.msk [vmem:[#allocation2 + $0xc0] sm:$0xff] %vm1383, %v1312
        %1398 = vst.msk [vmem:[#allocation2 + $0xd0] sm:$0x7f] %vm1385, %v1314
        %1399 = vst.msk [vmem:[#allocation2 + $0xe0] sm:$0xff] %vm1383, %v1316
        %1400 = vst.msk [vmem:[#allocation2 + $0xf0] sm:$0x7f] %vm1385, %v1318
        %1401 = vst.msk [vmem:[#allocation2 + $0x100] sm:$0xff] %vm1383, %v1320
        %1402 = vst.msk [vmem:[#allocation2 + $0x110] sm:$0x7f] %vm1385, %v1322
        %1403 = vst.msk [vmem:[#allocation2 + $0x120] sm:$0xff] %vm1383, %v1324
        %1404 = vst.msk [vmem:[#allocation2 + $0x130] sm:$0x7f] %vm1385, %v1326
        %1405 = vst.msk [vmem:[#allocation2 + $0x140] sm:$0xff] %vm1383, %v1328
        %1406 = vst.msk [vmem:[#allocation2 + $0x150] sm:$0x7f] %vm1385, %v1330
        %1407 = vst.msk [vmem:[#allocation2 + $0x160] sm:$0xff] %vm1383, %v1332
        %1408 = vst.msk [vmem:[#allocation2 + $0x170] sm:$0x7f] %vm1385, %v1334
        %1409 = vst.msk [vmem:[#allocation2 + $0x180] sm:$0xff] %vm1383, %v1336
        %1410 = vst.msk [vmem:[#allocation2 + $0x190] sm:$0x7f] %vm1385, %v1338
        %1411 = vst.msk [vmem:[#allocation2 + $0x1a0] sm:$0xff] %vm1383, %v1340
        %1412 = vst.msk [vmem:[#allocation2 + $0x1b0] sm:$0x7f] %vm1385, %v1342
        %1413 = vst.msk [vmem:[#allocation2 + $0x1c0] sm:$0xff] %vm1383, %v1344
        %1414 = vst.msk [vmem:[#allocation2 + $0x1d0] sm:$0x7f] %vm1385, %v1346
        %1415 = vst.msk [vmem:[#allocation2 + $0x1e0] sm:$0xff] %vm1383, %v1348
        %1416 = vst.msk [vmem:[#allocation2 + $0x1f0] sm:$0x7f] %vm1385, %v1350
        %s1417 = scalar_lea.vmem %s163, 16 [#allocation3]
        %v1418 = vld [vmem:[%s1417] sm:$0xff]
        %v1419 = vld [vmem:[%s1417 + $0x8] sm:$0x7f]
        %v1420 = vld [vmem:[%s1417 + $0x10] sm:$0xff]
        %v1421 = vld [vmem:[%s1417 + $0x18] sm:$0x7f]
        %v1422 = vld [vmem:[%s1417 + $0x20] sm:$0xff]
        %v1423 = vld [vmem:[%s1417 + $0x28] sm:$0x7f]
        %v1424 = vld [vmem:[%s1417 + $0x30] sm:$0xff]
        %v1425 = vld [vmem:[%s1417 + $0x38] sm:$0x7f]
        %v1426 = vld [vmem:[%s1417 + $0x40] sm:$0xff]
        %v1427 = vld [vmem:[%s1417 + $0x48] sm:$0x7f]
        %v1428 = vld [vmem:[%s1417 + $0x50] sm:$0xff]
        %v1429 = vld [vmem:[%s1417 + $0x58] sm:$0x7f]
        %v1430 = vld [vmem:[%s1417 + $0x60] sm:$0xff]
        %v1431 = vld [vmem:[%s1417 + $0x68] sm:$0x7f]
        %v1432 = vld [vmem:[%s1417 + $0x70] sm:$0xff]
        %v1433 = vld [vmem:[%s1417 + $0x78] sm:$0x7f]
        %v1434 = vld [vmem:[%s1417 + $0x80] sm:$0xff]
        %v1435 = vld [vmem:[%s1417 + $0x88] sm:$0x7f]
        %v1436 = vld [vmem:[%s1417 + $0x90] sm:$0xff]
        %v1437 = vld [vmem:[%s1417 + $0x98] sm:$0x7f]
        %v1438 = vld [vmem:[%s1417 + $0xa0] sm:$0xff]
        %v1439 = vld [vmem:[%s1417 + $0xa8] sm:$0x7f]
        %v1440 = vld [vmem:[%s1417 + $0xb0] sm:$0xff]
        %v1441 = vld [vmem:[%s1417 + $0xb8] sm:$0x7f]
        %v1442 = vld [vmem:[%s1417 + $0xc0] sm:$0xff]
        %v1443 = vld [vmem:[%s1417 + $0xc8] sm:$0x7f]
        %v1444 = vld [vmem:[%s1417 + $0xd0] sm:$0xff]
        %v1445 = vld [vmem:[%s1417 + $0xd8] sm:$0x7f]
        %v1446 = vld [vmem:[%s1417 + $0xe0] sm:$0xff]
        %v1447 = vld [vmem:[%s1417 + $0xe8] sm:$0x7f]
        %v1478 = vrot.slane %v1418, 7
        %v1479 = vrot.slane %v1419, 7
        %v1480 = vsel %vm317, %v1478, %v1479
        %v1481 = vrot.slane %v1420, 7
        %v1482 = vrot.slane %v1421, 7
        %v1483 = vsel %vm317, %v1481, %v1482
        %v1484 = vrot.slane %v1422, 7
        %v1485 = vrot.slane %v1423, 7
        %v1486 = vsel %vm317, %v1484, %v1485
        %v1487 = vrot.slane %v1424, 7
        %v1488 = vrot.slane %v1425, 7
        %v1489 = vsel %vm317, %v1487, %v1488
        %v1490 = vrot.slane %v1426, 7
        %v1491 = vrot.slane %v1427, 7
        %v1492 = vsel %vm317, %v1490, %v1491
        %v1493 = vrot.slane %v1428, 7
        %v1494 = vrot.slane %v1429, 7
        %v1495 = vsel %vm317, %v1493, %v1494
        %v1496 = vrot.slane %v1430, 7
        %v1497 = vrot.slane %v1431, 7
        %v1498 = vsel %vm317, %v1496, %v1497
        %v1499 = vrot.slane %v1432, 7
        %v1500 = vrot.slane %v1433, 7
        %v1501 = vsel %vm317, %v1499, %v1500
        %v1502 = vrot.slane %v1434, 7
        %v1503 = vrot.slane %v1435, 7
        %v1504 = vsel %vm317, %v1502, %v1503
        %v1505 = vrot.slane %v1436, 7
        %v1506 = vrot.slane %v1437, 7
        %v1507 = vsel %vm317, %v1505, %v1506
        %v1508 = vrot.slane %v1438, 7
        %v1509 = vrot.slane %v1439, 7
        %v1510 = vsel %vm317, %v1508, %v1509
        %v1511 = vrot.slane %v1440, 7
        %v1512 = vrot.slane %v1441, 7
        %v1513 = vsel %vm317, %v1511, %v1512
        %v1514 = vrot.slane %v1442, 7
        %v1515 = vrot.slane %v1443, 7
        %v1516 = vsel %vm317, %v1514, %v1515
        %v1517 = vrot.slane %v1444, 7
        %v1518 = vrot.slane %v1445, 7
        %v1519 = vsel %vm317, %v1517, %v1518
        %v1520 = vrot.slane %v1446, 7
        %v1521 = vrot.slane %v1447, 7
        %v1522 = vsel %vm317, %v1520, %v1521
        %1523 = vrot.lane.b32.xlu0 %v1478, 96
        %v1524 = vpop.permute.xlu0 %1523
        %1525 = vrot.lane.b32.xlu0 %v1480, 96
        %v1526 = vpop.permute.xlu0 %1525
        %1527 = vrot.lane.b32.xlu0 %v1481, 96
        %v1528 = vpop.permute.xlu0 %1527
        %1529 = vrot.lane.b32.xlu0 %v1483, 96
        %v1530 = vpop.permute.xlu0 %1529
        %1531 = vrot.lane.b32.xlu0 %v1484, 96
        %v1532 = vpop.permute.xlu0 %1531
        %1533 = vrot.lane.b32.xlu0 %v1486, 96
        %v1534 = vpop.permute.xlu0 %1533
        %1535 = vrot.lane.b32.xlu0 %v1487, 96
        %v1536 = vpop.permute.xlu0 %1535
        %1537 = vrot.lane.b32.xlu0 %v1489, 96
        %v1538 = vpop.permute.xlu0 %1537
        %1539 = vrot.lane.b32.xlu0 %v1490, 96
        %v1540 = vpop.permute.xlu0 %1539
        %1541 = vrot.lane.b32.xlu0 %v1492, 96
        %v1542 = vpop.permute.xlu0 %1541
        %1543 = vrot.lane.b32.xlu0 %v1493, 96
        %v1544 = vpop.permute.xlu0 %1543
        %1545 = vrot.lane.b32.xlu0 %v1495, 96
        %v1546 = vpop.permute.xlu0 %1545
        %1547 = vrot.lane.b32.xlu0 %v1496, 96
        %v1548 = vpop.permute.xlu0 %1547
        %1549 = vrot.lane.b32.xlu0 %v1498, 96
        %v1550 = vpop.permute.xlu0 %1549
        %1551 = vrot.lane.b32.xlu0 %v1499, 96
        %v1552 = vpop.permute.xlu0 %1551
        %1553 = vrot.lane.b32.xlu0 %v1501, 96
        %v1554 = vpop.permute.xlu0 %1553
        %1555 = vrot.lane.b32.xlu0 %v1502, 96
        %v1556 = vpop.permute.xlu0 %1555
        %1557 = vrot.lane.b32.xlu0 %v1504, 96
        %v1558 = vpop.permute.xlu0 %1557
        %1559 = vrot.lane.b32.xlu0 %v1505, 96
        %v1560 = vpop.permute.xlu0 %1559
        %1561 = vrot.lane.b32.xlu0 %v1507, 96
        %v1562 = vpop.permute.xlu0 %1561
        %1563 = vrot.lane.b32.xlu0 %v1508, 96
        %v1564 = vpop.permute.xlu0 %1563
        %1565 = vrot.lane.b32.xlu0 %v1510, 96
        %v1566 = vpop.permute.xlu0 %1565
        %1567 = vrot.lane.b32.xlu0 %v1511, 96
        %v1568 = vpop.permute.xlu0 %1567
        %1569 = vrot.lane.b32.xlu0 %v1513, 96
        %v1570 = vpop.permute.xlu0 %1569
        %1571 = vrot.lane.b32.xlu0 %v1514, 96
        %v1572 = vpop.permute.xlu0 %1571
        %1573 = vrot.lane.b32.xlu0 %v1516, 96
        %v1574 = vpop.permute.xlu0 %1573
        %1575 = vrot.lane.b32.xlu0 %v1517, 96
        %v1576 = vpop.permute.xlu0 %1575
        %1577 = vrot.lane.b32.xlu0 %v1519, 96
        %v1578 = vpop.permute.xlu0 %1577
        %1579 = vrot.lane.b32.xlu0 %v1520, 96
        %v1580 = vpop.permute.xlu0 %1579
        %1581 = vrot.lane.b32.xlu0 %v1522, 96
        %v1582 = vpop.permute.xlu0 %1581
        %vm1613 = vcmask 917249
        %1614 = vst.msk [vmem:[#allocation2] sm:$0xfe] %vm1613, %v1524
        %vm1615 = vcmask 917248
        %1616 = vst.msk [vmem:[#allocation2 + $0x10] sm:$0xff] %vm1615, %v1526
        %1617 = vst.msk [vmem:[#allocation2 + $0x20] sm:$0xfe] %vm1613, %v1528
        %1618 = vst.msk [vmem:[#allocation2 + $0x30] sm:$0xff] %vm1615, %v1530
        %1619 = vst.msk [vmem:[#allocation2 + $0x40] sm:$0xfe] %vm1613, %v1532
        %1620 = vst.msk [vmem:[#allocation2 + $0x50] sm:$0xff] %vm1615, %v1534
        %1621 = vst.msk [vmem:[#allocation2 + $0x60] sm:$0xfe] %vm1613, %v1536
        %1622 = vst.msk [vmem:[#allocation2 + $0x70] sm:$0xff] %vm1615, %v1538
        %1623 = vst.msk [vmem:[#allocation2 + $0x80] sm:$0xfe] %vm1613, %v1540
        %1624 = vst.msk [vmem:[#allocation2 + $0x90] sm:$0xff] %vm1615, %v1542
        %1625 = vst.msk [vmem:[#allocation2 + $0xa0] sm:$0xfe] %vm1613, %v1544
        %1626 = vst.msk [vmem:[#allocation2 + $0xb0] sm:$0xff] %vm1615, %v1546
        %1627 = vst.msk [vmem:[#allocation2 + $0xc0] sm:$0xfe] %vm1613, %v1548
        %1628 = vst.msk [vmem:[#allocation2 + $0xd0] sm:$0xff] %vm1615, %v1550
        %1629 = vst.msk [vmem:[#allocation2 + $0xe0] sm:$0xfe] %vm1613, %v1552
        %1630 = vst.msk [vmem:[#allocation2 + $0xf0] sm:$0xff] %vm1615, %v1554
        %1631 = vst.msk [vmem:[#allocation2 + $0x100] sm:$0xfe] %vm1613, %v1556
        %1632 = vst.msk [vmem:[#allocation2 + $0x110] sm:$0xff] %vm1615, %v1558
        %1633 = vst.msk [vmem:[#allocation2 + $0x120] sm:$0xfe] %vm1613, %v1560
        %1634 = vst.msk [vmem:[#allocation2 + $0x130] sm:$0xff] %vm1615, %v1562
        %1635 = vst.msk [vmem:[#allocation2 + $0x140] sm:$0xfe] %vm1613, %v1564
        %1636 = vst.msk [vmem:[#allocation2 + $0x150] sm:$0xff] %vm1615, %v1566
        %1637 = vst.msk [vmem:[#allocation2 + $0x160] sm:$0xfe] %vm1613, %v1568
        %1638 = vst.msk [vmem:[#allocation2 + $0x170] sm:$0xff] %vm1615, %v1570
        %1639 = vst.msk [vmem:[#allocation2 + $0x180] sm:$0xfe] %vm1613, %v1572
        %1640 = vst.msk [vmem:[#allocation2 + $0x190] sm:$0xff] %vm1615, %v1574
        %1641 = vst.msk [vmem:[#allocation2 + $0x1a0] sm:$0xfe] %vm1613, %v1576
        %1642 = vst.msk [vmem:[#allocation2 + $0x1b0] sm:$0xff] %vm1615, %v1578
        %1643 = vst.msk [vmem:[#allocation2 + $0x1c0] sm:$0xfe] %vm1613, %v1580
        %1644 = vst.msk [vmem:[#allocation2 + $0x1d0] sm:$0xff] %vm1615, %v1582
        %v1645 = vld [vmem:[%s1417] sm:$0xff]
        %v1646 = vld [vmem:[%s1417 + $0x8] sm:$0xff]
        %v1647 = vld [vmem:[%s1417 + $0x10] sm:$0xff]
        %v1648 = vld [vmem:[%s1417 + $0x18] sm:$0xff]
        %v1649 = vld [vmem:[%s1417 + $0x20] sm:$0xff]
        %v1650 = vld [vmem:[%s1417 + $0x28] sm:$0xff]
        %v1651 = vld [vmem:[%s1417 + $0x30] sm:$0xff]
        %v1652 = vld [vmem:[%s1417 + $0x38] sm:$0xff]
        %v1653 = vld [vmem:[%s1417 + $0x40] sm:$0xff]
        %v1654 = vld [vmem:[%s1417 + $0x48] sm:$0xff]
        %v1655 = vld [vmem:[%s1417 + $0x50] sm:$0xff]
        %v1656 = vld [vmem:[%s1417 + $0x58] sm:$0xff]
        %v1657 = vld [vmem:[%s1417 + $0x60] sm:$0xff]
        %v1658 = vld [vmem:[%s1417 + $0x68] sm:$0xff]
        %v1659 = vld [vmem:[%s1417 + $0x70] sm:$0xff]
        %v1660 = vld [vmem:[%s1417 + $0x78] sm:$0xff]
        %v1661 = vld [vmem:[%s1417 + $0x80] sm:$0xff]
        %v1662 = vld [vmem:[%s1417 + $0x88] sm:$0xff]
        %v1663 = vld [vmem:[%s1417 + $0x90] sm:$0xff]
        %v1664 = vld [vmem:[%s1417 + $0x98] sm:$0xff]
        %v1665 = vld [vmem:[%s1417 + $0xa0] sm:$0xff]
        %v1666 = vld [vmem:[%s1417 + $0xa8] sm:$0xff]
        %v1667 = vld [vmem:[%s1417 + $0xb0] sm:$0xff]
        %v1668 = vld [vmem:[%s1417 + $0xb8] sm:$0xff]
        %v1669 = vld [vmem:[%s1417 + $0xc0] sm:$0xff]
        %v1670 = vld [vmem:[%s1417 + $0xc8] sm:$0xff]
        %v1671 = vld [vmem:[%s1417 + $0xd0] sm:$0xff]
        %v1672 = vld [vmem:[%s1417 + $0xd8] sm:$0xff]
        %v1673 = vld [vmem:[%s1417 + $0xe0] sm:$0xff]
        %v1674 = vld [vmem:[%s1417 + $0xe8] sm:$0xff]
        %1705 = vrot.lane.b32.xlu0 %v1645, 112
        %v1706 = vpop.permute.xlu0 %1705
        %1707 = vrot.lane.b32.xlu0 %v1646, 112
        %v1708 = vpop.permute.xlu0 %1707
        %1709 = vrot.lane.b32.xlu0 %v1647, 112
        %v1710 = vpop.permute.xlu0 %1709
        %1711 = vrot.lane.b32.xlu0 %v1648, 112
        %v1712 = vpop.permute.xlu0 %1711
        %1713 = vrot.lane.b32.xlu0 %v1649, 112
        %v1714 = vpop.permute.xlu0 %1713
        %1715 = vrot.lane.b32.xlu0 %v1650, 112
        %v1716 = vpop.permute.xlu0 %1715
        %1717 = vrot.lane.b32.xlu0 %v1651, 112
        %v1718 = vpop.permute.xlu0 %1717
        %1719 = vrot.lane.b32.xlu0 %v1652, 112
        %v1720 = vpop.permute.xlu0 %1719
        %1721 = vrot.lane.b32.xlu0 %v1653, 112
        %v1722 = vpop.permute.xlu0 %1721
        %1723 = vrot.lane.b32.xlu0 %v1654, 112
        %v1724 = vpop.permute.xlu0 %1723
        %1725 = vrot.lane.b32.xlu0 %v1655, 112
        %v1726 = vpop.permute.xlu0 %1725
        %1727 = vrot.lane.b32.xlu0 %v1656, 112
        %v1728 = vpop.permute.xlu0 %1727
        %1729 = vrot.lane.b32.xlu0 %v1657, 112
        %v1730 = vpop.permute.xlu0 %1729
        %1731 = vrot.lane.b32.xlu0 %v1658, 112
        %v1732 = vpop.permute.xlu0 %1731
        %1733 = vrot.lane.b32.xlu0 %v1659, 112
        %v1734 = vpop.permute.xlu0 %1733
        %1735 = vrot.lane.b32.xlu0 %v1660, 112
        %v1736 = vpop.permute.xlu0 %1735
        %1737 = vrot.lane.b32.xlu0 %v1661, 112
        %v1738 = vpop.permute.xlu0 %1737
        %1739 = vrot.lane.b32.xlu0 %v1662, 112
        %v1740 = vpop.permute.xlu0 %1739
        %1741 = vrot.lane.b32.xlu0 %v1663, 112
        %v1742 = vpop.permute.xlu0 %1741
        %1743 = vrot.lane.b32.xlu0 %v1664, 112
        %v1744 = vpop.permute.xlu0 %1743
        %1745 = vrot.lane.b32.xlu0 %v1665, 112
        %v1746 = vpop.permute.xlu0 %1745
        %1747 = vrot.lane.b32.xlu0 %v1666, 112
        %v1748 = vpop.permute.xlu0 %1747
        %1749 = vrot.lane.b32.xlu0 %v1667, 112
        %v1750 = vpop.permute.xlu0 %1749
        %1751 = vrot.lane.b32.xlu0 %v1668, 112
        %v1752 = vpop.permute.xlu0 %1751
        %1753 = vrot.lane.b32.xlu0 %v1669, 112
        %v1754 = vpop.permute.xlu0 %1753
        %1755 = vrot.lane.b32.xlu0 %v1670, 112
        %v1756 = vpop.permute.xlu0 %1755
        %1757 = vrot.lane.b32.xlu0 %v1671, 112
        %v1758 = vpop.permute.xlu0 %1757
        %1759 = vrot.lane.b32.xlu0 %v1672, 112
        %v1760 = vpop.permute.xlu0 %1759
        %1761 = vrot.lane.b32.xlu0 %v1673, 112
        %v1762 = vpop.permute.xlu0 %1761
        %1763 = vrot.lane.b32.xlu0 %v1674, 112
        %v1764 = vpop.permute.xlu0 %1763
        %vm1795 = vcmask 1048448
        %1796 = vst.msk [vmem:[#allocation2] sm:$0xff] %vm1795, %v1706
        %1797 = vst.msk [vmem:[#allocation2 + $0x10] sm:$0xff] %vm1795, %v1708
        %1798 = vst.msk [vmem:[#allocation2 + $0x20] sm:$0xff] %vm1795, %v1710
        %1799 = vst.msk [vmem:[#allocation2 + $0x30] sm:$0xff] %vm1795, %v1712
        %1800 = vst.msk [vmem:[#allocation2 + $0x40] sm:$0xff] %vm1795, %v1714
        %1801 = vst.msk [vmem:[#allocation2 + $0x50] sm:$0xff] %vm1795, %v1716
        %1802 = vst.msk [vmem:[#allocation2 + $0x60] sm:$0xff] %vm1795, %v1718
        %1803 = vst.msk [vmem:[#allocation2 + $0x70] sm:$0xff] %vm1795, %v1720
        %1804 = vst.msk [vmem:[#allocation2 + $0x80] sm:$0xff] %vm1795, %v1722
        %1805 = vst.msk [vmem:[#allocation2 + $0x90] sm:$0xff] %vm1795, %v1724
        %1806 = vst.msk [vmem:[#allocation2 + $0xa0] sm:$0xff] %vm1795, %v1726
        %1807 = vst.msk [vmem:[#allocation2 + $0xb0] sm:$0xff] %vm1795, %v1728
        %1808 = vst.msk [vmem:[#allocation2 + $0xc0] sm:$0xff] %vm1795, %v1730
        %1809 = vst.msk [vmem:[#allocation2 + $0xd0] sm:$0xff] %vm1795, %v1732
        %1810 = vst.msk [vmem:[#allocation2 + $0xe0] sm:$0xff] %vm1795, %v1734
        %1811 = vst.msk [vmem:[#allocation2 + $0xf0] sm:$0xff] %vm1795, %v1736
        %1812 = vst.msk [vmem:[#allocation2 + $0x100] sm:$0xff] %vm1795, %v1738
        %1813 = vst.msk [vmem:[#allocation2 + $0x110] sm:$0xff] %vm1795, %v1740
        %1814 = vst.msk [vmem:[#allocation2 + $0x120] sm:$0xff] %vm1795, %v1742
        %1815 = vst.msk [vmem:[#allocation2 + $0x130] sm:$0xff] %vm1795, %v1744
        %1816 = vst.msk [vmem:[#allocation2 + $0x140] sm:$0xff] %vm1795, %v1746
        %1817 = vst.msk [vmem:[#allocation2 + $0x150] sm:$0xff] %vm1795, %v1748
        %1818 = vst.msk [vmem:[#allocation2 + $0x160] sm:$0xff] %vm1795, %v1750
        %1819 = vst.msk [vmem:[#allocation2 + $0x170] sm:$0xff] %vm1795, %v1752
        %1820 = vst.msk [vmem:[#allocation2 + $0x180] sm:$0xff] %vm1795, %v1754
        %1821 = vst.msk [vmem:[#allocation2 + $0x190] sm:$0xff] %vm1795, %v1756
        %1822 = vst.msk [vmem:[#allocation2 + $0x1a0] sm:$0xff] %vm1795, %v1758
        %1823 = vst.msk [vmem:[#allocation2 + $0x1b0] sm:$0xff] %vm1795, %v1760
        %1824 = vst.msk [vmem:[#allocation2 + $0x1c0] sm:$0xff] %vm1795, %v1762
        %1825 = vst.msk [vmem:[#allocation2 + $0x1d0] sm:$0xff] %vm1795, %v1764
        %v1826 = vld [vmem:[%s1417 + $0x1] sm:$0xff]
        %v1827 = vld [vmem:[%s1417 + $0x9] sm:$0x7f]
        %v1828 = vld [vmem:[%s1417 + $0x11] sm:$0xff]
        %v1829 = vld [vmem:[%s1417 + $0x19] sm:$0x7f]
        %v1830 = vld [vmem:[%s1417 + $0x21] sm:$0xff]
        %v1831 = vld [vmem:[%s1417 + $0x29] sm:$0x7f]
        %v1832 = vld [vmem:[%s1417 + $0x31] sm:$0xff]
        %v1833 = vld [vmem:[%s1417 + $0x39] sm:$0x7f]
        %v1834 = vld [vmem:[%s1417 + $0x41] sm:$0xff]
        %v1835 = vld [vmem:[%s1417 + $0x49] sm:$0x7f]
        %v1836 = vld [vmem:[%s1417 + $0x51] sm:$0xff]
        %v1837 = vld [vmem:[%s1417 + $0x59] sm:$0x7f]
        %v1838 = vld [vmem:[%s1417 + $0x61] sm:$0xff]
        %v1839 = vld [vmem:[%s1417 + $0x69] sm:$0x7f]
        %v1840 = vld [vmem:[%s1417 + $0x71] sm:$0xff]
        %v1841 = vld [vmem:[%s1417 + $0x79] sm:$0x7f]
        %v1842 = vld [vmem:[%s1417 + $0x81] sm:$0xff]
        %v1843 = vld [vmem:[%s1417 + $0x89] sm:$0x7f]
        %v1844 = vld [vmem:[%s1417 + $0x91] sm:$0xff]
        %v1845 = vld [vmem:[%s1417 + $0x99] sm:$0x7f]
        %v1846 = vld [vmem:[%s1417 + $0xa1] sm:$0xff]
        %v1847 = vld [vmem:[%s1417 + $0xa9] sm:$0x7f]
        %v1848 = vld [vmem:[%s1417 + $0xb1] sm:$0xff]
        %v1849 = vld [vmem:[%s1417 + $0xb9] sm:$0x7f]
        %v1850 = vld [vmem:[%s1417 + $0xc1] sm:$0xff]
        %v1851 = vld [vmem:[%s1417 + $0xc9] sm:$0x7f]
        %v1852 = vld [vmem:[%s1417 + $0xd1] sm:$0xff]
        %v1853 = vld [vmem:[%s1417 + $0xd9] sm:$0x7f]
        %v1854 = vld [vmem:[%s1417 + $0xe1] sm:$0xff]
        %v1855 = vld [vmem:[%s1417 + $0xe9] sm:$0x7f]
        %1856 = vst.msk [vmem:[#allocation2 + $0x8] sm:$0xff] %vm193, %v1826
        %vm1857 = vcmask 129024
        %1858 = vst.msk [vmem:[#allocation2 + $0x18] sm:$0x7f] %vm1857, %v1827
        %1859 = vst.msk [vmem:[#allocation2 + $0x28] sm:$0xff] %vm193, %v1828
        %1860 = vst.msk [vmem:[#allocation2 + $0x38] sm:$0x7f] %vm1857, %v1829
        %1861 = vst.msk [vmem:[#allocation2 + $0x48] sm:$0xff] %vm193, %v1830
        %1862 = vst.msk [vmem:[#allocation2 + $0x58] sm:$0x7f] %vm1857, %v1831
        %1863 = vst.msk [vmem:[#allocation2 + $0x68] sm:$0xff] %vm193, %v1832
        %1864 = vst.msk [vmem:[#allocation2 + $0x78] sm:$0x7f] %vm1857, %v1833
        %1865 = vst.msk [vmem:[#allocation2 + $0x88] sm:$0xff] %vm193, %v1834
        %1866 = vst.msk [vmem:[#allocation2 + $0x98] sm:$0x7f] %vm1857, %v1835
        %1867 = vst.msk [vmem:[#allocation2 + $0xa8] sm:$0xff] %vm193, %v1836
        %1868 = vst.msk [vmem:[#allocation2 + $0xb8] sm:$0x7f] %vm1857, %v1837
        %1869 = vst.msk [vmem:[#allocation2 + $0xc8] sm:$0xff] %vm193, %v1838
        %1870 = vst.msk [vmem:[#allocation2 + $0xd8] sm:$0x7f] %vm1857, %v1839
        %1871 = vst.msk [vmem:[#allocation2 + $0xe8] sm:$0xff] %vm193, %v1840
        %1872 = vst.msk [vmem:[#allocation2 + $0xf8] sm:$0x7f] %vm1857, %v1841
        %1873 = vst.msk [vmem:[#allocation2 + $0x108] sm:$0xff] %vm193, %v1842
        %1874 = vst.msk [vmem:[#allocation2 + $0x118] sm:$0x7f] %vm1857, %v1843
        %1875 = vst.msk [vmem:[#allocation2 + $0x128] sm:$0xff] %vm193, %v1844
        %1876 = vst.msk [vmem:[#allocation2 + $0x138] sm:$0x7f] %vm1857, %v1845
        %1877 = vst.msk [vmem:[#allocation2 + $0x148] sm:$0xff] %vm193, %v1846
        %1878 = vst.msk [vmem:[#allocation2 + $0x158] sm:$0x7f] %vm1857, %v1847
        %1879 = vst.msk [vmem:[#allocation2 + $0x168] sm:$0xff] %vm193, %v1848
        %1880 = vst.msk [vmem:[#allocation2 + $0x178] sm:$0x7f] %vm1857, %v1849
        %1881 = vst.msk [vmem:[#allocation2 + $0x188] sm:$0xff] %vm193, %v1850
        %1882 = vst.msk [vmem:[#allocation2 + $0x198] sm:$0x7f] %vm1857, %v1851
        %1883 = vst.msk [vmem:[#allocation2 + $0x1a8] sm:$0xff] %vm193, %v1852
        %1884 = vst.msk [vmem:[#allocation2 + $0x1b8] sm:$0x7f] %vm1857, %v1853
        %1885 = vst.msk [vmem:[#allocation2 + $0x1c8] sm:$0xff] %vm193, %v1854
        %1886 = vst.msk [vmem:[#allocation2 + $0x1d8] sm:$0x7f] %vm1857, %v1855
        %v1887 = vld [vmem:[#allocation2] sm:$0xff]
        %v1888 = vld [vmem:[#allocation2 + $0x8] sm:$0xff]
        %v1889 = vld [vmem:[#allocation2 + $0x10] sm:$0xff]
        %v1890 = vld [vmem:[#allocation2 + $0x18] sm:$0xff]
        %v1891 = vld [vmem:[#allocation2 + $0x20] sm:$0xff]
        %v1892 = vld [vmem:[#allocation2 + $0x28] sm:$0xff]
        %v1893 = vld [vmem:[#allocation2 + $0x30] sm:$0xff]
        %v1894 = vld [vmem:[#allocation2 + $0x38] sm:$0xff]
        %v1895 = vld [vmem:[#allocation2 + $0x40] sm:$0xff]
        %v1896 = vld [vmem:[#allocation2 + $0x48] sm:$0xff]
        %v1897 = vld [vmem:[#allocation2 + $0x50] sm:$0xff]
        %v1898 = vld [vmem:[#allocation2 + $0x58] sm:$0xff]
        %v1899 = vld [vmem:[#allocation2 + $0x60] sm:$0xff]
        %v1900 = vld [vmem:[#allocation2 + $0x68] sm:$0xff]
        %v1901 = vld [vmem:[#allocation2 + $0x70] sm:$0xff]
        %v1902 = vld [vmem:[#allocation2 + $0x78] sm:$0xff]
        %v1903 = vld [vmem:[#allocation2 + $0x80] sm:$0xff]
        %v1904 = vld [vmem:[#allocation2 + $0x88] sm:$0xff]
        %v1905 = vld [vmem:[#allocation2 + $0x90] sm:$0xff]
        %v1906 = vld [vmem:[#allocation2 + $0x98] sm:$0xff]
        %v1907 = vld [vmem:[#allocation2 + $0xa0] sm:$0xff]
        %v1908 = vld [vmem:[#allocation2 + $0xa8] sm:$0xff]
        %v1909 = vld [vmem:[#allocation2 + $0xb0] sm:$0xff]
        %v1910 = vld [vmem:[#allocation2 + $0xb8] sm:$0xff]
        %v1911 = vld [vmem:[#allocation2 + $0xc0] sm:$0xff]
        %v1912 = vld [vmem:[#allocation2 + $0xc8] sm:$0xff]
        %v1913 = vld [vmem:[#allocation2 + $0xd0] sm:$0xff]
        %v1914 = vld [vmem:[#allocation2 + $0xd8] sm:$0xff]
        %v1915 = vld [vmem:[#allocation2 + $0xe0] sm:$0xff]
        %v1916 = vld [vmem:[#allocation2 + $0xe8] sm:$0xff]
        %v1917 = vld [vmem:[#allocation2 + $0xf0] sm:$0xff]
        %v1918 = vld [vmem:[#allocation2 + $0xf8] sm:$0xff]
        %v1919 = vld [vmem:[#allocation2 + $0x100] sm:$0xff]
        %v1920 = vld [vmem:[#allocation2 + $0x108] sm:$0xff]
        %v1921 = vld [vmem:[#allocation2 + $0x110] sm:$0xff]
        %v1922 = vld [vmem:[#allocation2 + $0x118] sm:$0xff]
        %v1923 = vld [vmem:[#allocation2 + $0x120] sm:$0xff]
        %v1924 = vld [vmem:[#allocation2 + $0x128] sm:$0xff]
        %v1925 = vld [vmem:[#allocation2 + $0x130] sm:$0xff]
        %v1926 = vld [vmem:[#allocation2 + $0x138] sm:$0xff]
        %v1927 = vld [vmem:[#allocation2 + $0x140] sm:$0xff]
        %v1928 = vld [vmem:[#allocation2 + $0x148] sm:$0xff]
        %v1929 = vld [vmem:[#allocation2 + $0x150] sm:$0xff]
        %v1930 = vld [vmem:[#allocation2 + $0x158] sm:$0xff]
        %v1931 = vld [vmem:[#allocation2 + $0x160] sm:$0xff]
        %v1932 = vld [vmem:[#allocation2 + $0x168] sm:$0xff]
        %v1933 = vld [vmem:[#allocation2 + $0x170] sm:$0xff]
        %v1934 = vld [vmem:[#allocation2 + $0x178] sm:$0xff]
        %v1935 = vld [vmem:[#allocation2 + $0x180] sm:$0xff]
        %v1936 = vld [vmem:[#allocation2 + $0x188] sm:$0xff]
        %v1937 = vld [vmem:[#allocation2 + $0x190] sm:$0xff]
        %v1938 = vld [vmem:[#allocation2 + $0x198] sm:$0xff]
        %v1939 = vld [vmem:[#allocation2 + $0x1a0] sm:$0xff]
        %v1940 = vld [vmem:[#allocation2 + $0x1a8] sm:$0xff]
        %v1941 = vld [vmem:[#allocation2 + $0x1b0] sm:$0xff]
        %v1942 = vld [vmem:[#allocation2 + $0x1b8] sm:$0xff]
        %v1943 = vld [vmem:[#allocation2 + $0x1c0] sm:$0xff]
        %v1944 = vld [vmem:[#allocation2 + $0x1c8] sm:$0xff]
        %v1945 = vld [vmem:[#allocation2 + $0x1d0] sm:$0xff]
        %v1946 = vld [vmem:[#allocation2 + $0x1d8] sm:$0xff]
        %v1947 = vld [vmem:[#allocation2 + $0x1e0] sm:$0xff]
        %v1948 = vld [vmem:[#allocation2 + $0x1e8] sm:$0xff]
        %v1949 = vld [vmem:[#allocation2 + $0x1f0] sm:$0xff]
        %v1950 = vld [vmem:[#allocation2 + $0x1f8] sm:$0xff]
        %v1951 = vpack.c.bf16 %v1889, %v1887
        %v1952 = vpack.c.bf16 %v1890, %v1888
        %v1953 = vpack.c.bf16 %v1893, %v1891
        %v1954 = vpack.c.bf16 %v1894, %v1892
        %v1955 = vpack.c.bf16 %v1897, %v1895
        %v1956 = vpack.c.bf16 %v1898, %v1896
        %v1957 = vpack.c.bf16 %v1901, %v1899
        %v1958 = vpack.c.bf16 %v1902, %v1900
        %v1959 = vpack.c.bf16 %v1905, %v1903
        %v1960 = vpack.c.bf16 %v1906, %v1904
        %v1961 = vpack.c.bf16 %v1909, %v1907
        %v1962 = vpack.c.bf16 %v1910, %v1908
        %v1963 = vpack.c.bf16 %v1913, %v1911
        %v1964 = vpack.c.bf16 %v1914, %v1912
        %v1965 = vpack.c.bf16 %v1917, %v1915
        %v1966 = vpack.c.bf16 %v1918, %v1916
        %v1967 = vpack.c.bf16 %v1921, %v1919
        %v1968 = vpack.c.bf16 %v1922, %v1920
        %v1969 = vpack.c.bf16 %v1925, %v1923
        %v1970 = vpack.c.bf16 %v1926, %v1924
        %v1971 = vpack.c.bf16 %v1929, %v1927
        %v1972 = vpack.c.bf16 %v1930, %v1928
        %v1973 = vpack.c.bf16 %v1933, %v1931
        %v1974 = vpack.c.bf16 %v1934, %v1932
        %v1975 = vpack.c.bf16 %v1937, %v1935
        %v1976 = vpack.c.bf16 %v1938, %v1936
        %v1977 = vpack.c.bf16 %v1941, %v1939
        %v1978 = vpack.c.bf16 %v1942, %v1940
        %v1979 = vpack.c.bf16 %v1945, %v1943
        %v1980 = vpack.c.bf16 %v1946, %v1944
        %v1981 = vpack.c.bf16 %v1949, %v1947
        %v1982 = vpack.c.bf16 %v1950, %v1948
        %v1983 = vld [vmem:[%s1] sm:$0xf]
        %v1984 = vld [vmem:[%s1 + $0x4] sm:$0xf]
        %v1985 = vld [vmem:[%s1 + $0x8] sm:$0xf]
        %v1986 = vld [vmem:[%s1 + $0xc] sm:$0xf]
        %v1987 = vld [vmem:[%s1 + $0x10] sm:$0xf]
        %v1988 = vld [vmem:[%s1 + $0x14] sm:$0xf]
        %v1989 = vld [vmem:[%s1 + $0x18] sm:$0xf]
        %v1990 = vld [vmem:[%s1 + $0x1c] sm:$0xf]
        %v1991 = vld [vmem:[%s1 + $0x20] sm:$0xf]
        %v1992 = vld [vmem:[%s1 + $0x24] sm:$0xf]
        %v1993 = vld [vmem:[%s1 + $0x28] sm:$0xf]
        %v1994 = vld [vmem:[%s1 + $0x2c] sm:$0xf]
        %v1995 = vld [vmem:[%s1 + $0x30] sm:$0xf]
        %v1996 = vld [vmem:[%s1 + $0x34] sm:$0xf]
        %v1997 = vld [vmem:[%s1 + $0x38] sm:$0xf]
        %v1998 = vld [vmem:[%s1 + $0x3c] sm:$0xf]
        %v1999 = vld [vmem:[%s1 + $0x40] sm:$0xf]
        %v2000 = vld [vmem:[%s1 + $0x44] sm:$0xf]
        %v2001 = vld [vmem:[%s2] sm:$0x1]
        %v2003 = vlaneseq
        %v2004 = vshrl.u32 %v2003, 7
        %v2005 = vsub.s32 0, %v2004
        %v2006 = vrot.slane %v2001, %v2005
        %v2026 = vunpack.c.l.b16 %v1983
        %v2027 = vunpack.c.l.b16 %v1984
        %v2028 = vunpack.c.l.b16 %v1985
        %v2029 = vunpack.c.l.b16 %v1986
        %v2030 = vunpack.c.l.b16 %v1987
        %v2031 = vunpack.c.l.b16 %v1988
        %v2032 = vunpack.c.l.b16 %v1989
        %v2033 = vunpack.c.l.b16 %v1990
        %v2034 = vunpack.c.l.b16 %v1991
        %v2035 = vunpack.c.l.b16 %v1992
        %v2036 = vunpack.c.l.b16 %v1993
        %v2037 = vunpack.c.l.b16 %v1994
        %v2038 = vunpack.c.l.b16 %v1995
        %v2039 = vunpack.c.l.b16 %v1996
        %v2040 = vunpack.c.l.b16 %v1997
        %v2041 = vunpack.c.l.b16 %v1998
        %v2042 = vunpack.c.l.b16 %v1999
        %v2043 = vunpack.c.l.b16 %v2000
        %v2044 = vpack.c.b16 %v2027, %v2026
        %v2045 = vpack.c.b16 %v2029, %v2028
        %v2046 = vpack.c.b16 %v2031, %v2030
        %v2047 = vpack.c.b16 %v2033, %v2032
        %v2048 = vpack.c.b16 %v2035, %v2034
        %v2049 = vpack.c.b16 %v2037, %v2036
        %v2050 = vpack.c.b16 %v2039, %v2038
        %v2051 = vpack.c.b16 %v2041, %v2040
        %v2052 = vpack.c.b16 %v2043, %v2042
        %v2063 = vsel %vm193, %v1952, 0
        %v2066 = vsel %vm193, %v1954, 0
        %v2069 = vsel %vm193, %v1956, 0
        %v2072 = vsel %vm193, %v1958, 0
        %v2075 = vsel %vm193, %v1960, 0
        %v2078 = vsel %vm193, %v1962, 0
        %v2081 = vsel %vm193, %v1964, 0
        %v2084 = vsel %vm193, %v1966, 0
        %v2087 = vsel %vm193, %v1968, 0
        %v2090 = vsel %vm193, %v1970, 0
        %v2093 = vsel %vm193, %v1972, 0
        %v2096 = vsel %vm193, %v1974, 0
        %v2099 = vsel %vm193, %v1976, 0
        %v2102 = vsel %vm193, %v1978, 0
        %v2105 = vsel %vm193, %v1980, 0
        %v2108 = vsel %vm193, %v1982, 0
        %2110 = vmatprep.subr.bf16.mxu0 0
        %2111 = vmatpush1.bf16.msra.mxu0 %v2051
        %2112 = vmatprep.subr.bf16.mxu0 0
        %2113 = vmatpush1.bf16.msra.mxu0 %v2050
        %2114 = vmatprep.subr.bf16.mxu0 0
        %2115 = vmatpush1.bf16.msra.mxu0 %v2049
        %2116 = vmatprep.subr.bf16.mxu0 0
        %2117 = vmatpush1.bf16.msra.mxu0 %v2048
        %2118 = vmatprep.subr.bf16.mxu0 0
        %2119 = vmatpush1.bf16.msra.mxu0 %v2047
        %2120 = vmatprep.subr.bf16.mxu0 0
        %2121 = vmatpush1.bf16.msra.mxu0 %v2046
        %2122 = vmatprep.subr.bf16.mxu0 0
        %2123 = vmatpush1.bf16.msra.mxu0 %v2045
        %2124 = vmatprep.subr.bf16.mxu0 0
        %2125 = vmatpush1.bf16.msra.mxu0 %v2044
        %2126 = vmatprep.subr.bf16.mxu0 0
        %2127 = vmatpush2.bf16.msra.mxu0 0
        %2128 = vmatprep.subr.bf16.mxu0 0
        %2129 = vmatpush2.bf16.msra.mxu0 0
        %2130 = vmatprep.subr.bf16.mxu0 0
        %2131 = vmatpush2.bf16.msra.mxu0 0
        %2132 = vmatprep.subr.bf16.mxu0 0
        %2133 = vmatpush2.bf16.msra.mxu0 0
        %2134 = vmatprep.subr.bf16.mxu0 0
        %2135 = vmatpush2.bf16.msra.mxu0 0
        %2136 = vmatprep.subr.bf16.mxu0 0
        %2137 = vmatpush2.bf16.msra.mxu0 0
        %2138 = vmatprep.subr.bf16.mxu0 0
        %2139 = vmatpush2.bf16.msra.mxu0 0
        %2140 = vmatprep.subr.bf16.mxu0 0
        %2141 = vmatpush2.bf16.msra.mxu0 %v2052
        %2142 = vmatprep.mubr.bf16.mxu0 %v2063
        %2143 = vmatmul.mubr.bf16.gmra.mxu0 %v1951
        %v2144 = vpop.f32.mrf.mxu0
        %v2145 = vadd.f32 %v2006, %v2144
        %v2146 = vpop.f32.mrf.mxu0
        %v2147 = vpop.f32.mrf.mxu0
        %v2148 = vadd.f32 %v2006, %v2147
        %v2149 = vpop.f32.mrf.mxu0
        %2150 = vmatprep.mubr.bf16.mxu0 %v2066
        %2151 = vmatmul.mubr.bf16.gmra.mxu0 %v1953
        %v2152 = vpop.f32.mrf.mxu0
        %v2153 = vadd.f32 %v2006, %v2152
        %v2154 = vpop.f32.mrf.mxu0
        %v2155 = vpop.f32.mrf.mxu0
        %v2156 = vadd.f32 %v2006, %v2155
        %v2157 = vpop.f32.mrf.mxu0
        %2158 = vmatprep.mubr.bf16.mxu0 %v2069
        %2159 = vmatmul.mubr.bf16.gmra.mxu0 %v1955
        %v2160 = vpop.f32.mrf.mxu0
        %v2161 = vadd.f32 %v2006, %v2160
        %v2162 = vpop.f32.mrf.mxu0
        %v2163 = vpop.f32.mrf.mxu0
        %v2164 = vadd.f32 %v2006, %v2163
        %v2165 = vpop.f32.mrf.mxu0
        %2166 = vmatprep.mubr.bf16.mxu0 %v2072
        %2167 = vmatmul.mubr.bf16.gmra.mxu0 %v1957
        %v2168 = vpop.f32.mrf.mxu0
        %v2169 = vadd.f32 %v2006, %v2168
        %v2170 = vpop.f32.mrf.mxu0
        %v2171 = vpop.f32.mrf.mxu0
        %v2172 = vadd.f32 %v2006, %v2171
        %v2173 = vpop.f32.mrf.mxu0
        %2174 = vmatprep.mubr.bf16.mxu0 %v2075
        %2175 = vmatmul.mubr.bf16.gmra.mxu0 %v1959
        %v2176 = vpop.f32.mrf.mxu0
        %v2177 = vadd.f32 %v2006, %v2176
        %v2178 = vpop.f32.mrf.mxu0
        %v2179 = vpop.f32.mrf.mxu0
        %v2180 = vadd.f32 %v2006, %v2179
        %v2181 = vpop.f32.mrf.mxu0
        %2182 = vmatprep.mubr.bf16.mxu0 %v2078
        %2183 = vmatmul.mubr.bf16.gmra.mxu0 %v1961
        %v2184 = vpop.f32.mrf.mxu0
        %v2185 = vadd.f32 %v2006, %v2184
        %v2186 = vpop.f32.mrf.mxu0
        %v2187 = vpop.f32.mrf.mxu0
        %v2188 = vadd.f32 %v2006, %v2187
        %v2189 = vpop.f32.mrf.mxu0
        %2190 = vmatprep.mubr.bf16.mxu0 %v2081
        %2191 = vmatmul.mubr.bf16.gmra.mxu0 %v1963
        %v2192 = vpop.f32.mrf.mxu0
        %v2193 = vadd.f32 %v2006, %v2192
        %v2194 = vpop.f32.mrf.mxu0
        %v2195 = vpop.f32.mrf.mxu0
        %v2196 = vadd.f32 %v2006, %v2195
        %v2197 = vpop.f32.mrf.mxu0
        %2198 = vmatprep.mubr.bf16.mxu0 %v2084
        %2199 = vmatmul.mubr.bf16.gmra.mxu0 %v1965
        %v2200 = vpop.f32.mrf.mxu0
        %v2201 = vadd.f32 %v2006, %v2200
        %v2202 = vpop.f32.mrf.mxu0
        %v2203 = vpop.f32.mrf.mxu0
        %v2204 = vadd.f32 %v2006, %v2203
        %v2205 = vpop.f32.mrf.mxu0
        %2206 = vmatprep.mubr.bf16.mxu0 %v2087
        %2207 = vmatmul.mubr.bf16.gmra.mxu0 %v1967
        %v2208 = vpop.f32.mrf.mxu0
        %v2209 = vadd.f32 %v2006, %v2208
        %v2210 = vpop.f32.mrf.mxu0
        %v2211 = vpop.f32.mrf.mxu0
        %v2212 = vadd.f32 %v2006, %v2211
        %v2213 = vpop.f32.mrf.mxu0
        %2214 = vmatprep.mubr.bf16.mxu0 %v2090
        %2215 = vmatmul.mubr.bf16.gmra.mxu0 %v1969
        %v2216 = vpop.f32.mrf.mxu0
        %v2217 = vadd.f32 %v2006, %v2216
        %v2218 = vpop.f32.mrf.mxu0
        %v2219 = vpop.f32.mrf.mxu0
        %v2220 = vadd.f32 %v2006, %v2219
        %v2221 = vpop.f32.mrf.mxu0
        %2222 = vmatprep.mubr.bf16.mxu0 %v2093
        %2223 = vmatmul.mubr.bf16.gmra.mxu0 %v1971
        %v2224 = vpop.f32.mrf.mxu0
        %v2225 = vadd.f32 %v2006, %v2224
        %v2226 = vpop.f32.mrf.mxu0
        %v2227 = vpop.f32.mrf.mxu0
        %v2228 = vadd.f32 %v2006, %v2227
        %v2229 = vpop.f32.mrf.mxu0
        %2230 = vmatprep.mubr.bf16.mxu0 %v2096
        %2231 = vmatmul.mubr.bf16.gmra.mxu0 %v1973
        %v2232 = vpop.f32.mrf.mxu0
        %v2233 = vadd.f32 %v2006, %v2232
        %v2234 = vpop.f32.mrf.mxu0
        %v2235 = vpop.f32.mrf.mxu0
        %v2236 = vadd.f32 %v2006, %v2235
        %v2237 = vpop.f32.mrf.mxu0
        %2238 = vmatprep.mubr.bf16.mxu0 %v2099
        %2239 = vmatmul.mubr.bf16.gmra.mxu0 %v1975
        %v2240 = vpop.f32.mrf.mxu0
        %v2241 = vadd.f32 %v2006, %v2240
        %v2242 = vpop.f32.mrf.mxu0
        %v2243 = vpop.f32.mrf.mxu0
        %v2244 = vadd.f32 %v2006, %v2243
        %v2245 = vpop.f32.mrf.mxu0
        %2246 = vmatprep.mubr.bf16.mxu0 %v2102
        %2247 = vmatmul.mubr.bf16.gmra.mxu0 %v1977
        %v2248 = vpop.f32.mrf.mxu0
        %v2249 = vadd.f32 %v2006, %v2248
        %v2250 = vpop.f32.mrf.mxu0
        %v2251 = vpop.f32.mrf.mxu0
        %v2252 = vadd.f32 %v2006, %v2251
        %v2253 = vpop.f32.mrf.mxu0
        %2254 = vmatprep.mubr.bf16.mxu0 %v2105
        %2255 = vmatmul.mubr.bf16.gmra.mxu0 %v1979
        %v2256 = vpop.f32.mrf.mxu0
        %v2257 = vadd.f32 %v2006, %v2256
        %v2258 = vpop.f32.mrf.mxu0
        %v2259 = vpop.f32.mrf.mxu0
        %v2260 = vadd.f32 %v2006, %v2259
        %v2261 = vpop.f32.mrf.mxu0
        %2262 = vmatprep.mubr.bf16.mxu0 %v2108
        %2263 = vmatmul.mubr.bf16.gmra.mxu0 %v1981
        %v2264 = vpop.f32.mrf.mxu0
        %v2265 = vadd.f32 %v2006, %v2264
        %v2266 = vpop.f32.mrf.mxu0
        %v2267 = vpop.f32.mrf.mxu0
        %v2268 = vadd.f32 %v2006, %v2267
        %v2269 = vpop.f32.mrf.mxu0
        %2270 = vdwg.mxu0
        %v2271 = vmax.f32 %v2145, 0.0
        %v2272 = vmax.f32 %v2148, 0.0
        %v2273 = vmax.f32 %v2153, 0.0
        %v2274 = vmax.f32 %v2156, 0.0
        %v2275 = vmax.f32 %v2161, 0.0
        %v2276 = vmax.f32 %v2164, 0.0
        %v2277 = vmax.f32 %v2169, 0.0
        %v2278 = vmax.f32 %v2172, 0.0
        %v2279 = vmax.f32 %v2177, 0.0
        %v2280 = vmax.f32 %v2180, 0.0
        %v2281 = vmax.f32 %v2185, 0.0
        %v2282 = vmax.f32 %v2188, 0.0
        %v2283 = vmax.f32 %v2193, 0.0
        %v2284 = vmax.f32 %v2196, 0.0
        %v2285 = vmax.f32 %v2201, 0.0
        %v2286 = vmax.f32 %v2204, 0.0
        %v2287 = vmax.f32 %v2209, 0.0
        %v2288 = vmax.f32 %v2212, 0.0
        %v2289 = vmax.f32 %v2217, 0.0
        %v2290 = vmax.f32 %v2220, 0.0
        %v2291 = vmax.f32 %v2225, 0.0
        %v2292 = vmax.f32 %v2228, 0.0
        %v2293 = vmax.f32 %v2233, 0.0
        %v2294 = vmax.f32 %v2236, 0.0
        %v2295 = vmax.f32 %v2241, 0.0
        %v2296 = vmax.f32 %v2244, 0.0
        %v2297 = vmax.f32 %v2249, 0.0
        %v2298 = vmax.f32 %v2252, 0.0
        %v2299 = vmax.f32 %v2257, 0.0
        %v2300 = vmax.f32 %v2260, 0.0
        %v2301 = vmax.f32 %v2265, 0.0
        %v2302 = vmax.f32 %v2268, 0.0
        %v2303 = vmin.f32 %v2271, 6.0
        %v2304 = vmin.f32 %v2272, 6.0
        %v2305 = vmin.f32 %v2273, 6.0
        %v2306 = vmin.f32 %v2274, 6.0
        %v2307 = vmin.f32 %v2275, 6.0
        %v2308 = vmin.f32 %v2276, 6.0
        %v2309 = vmin.f32 %v2277, 6.0
        %v2310 = vmin.f32 %v2278, 6.0
        %v2311 = vmin.f32 %v2279, 6.0
        %v2312 = vmin.f32 %v2280, 6.0
        %v2313 = vmin.f32 %v2281, 6.0
        %v2314 = vmin.f32 %v2282, 6.0
        %v2315 = vmin.f32 %v2283, 6.0
        %v2316 = vmin.f32 %v2284, 6.0
        %v2317 = vmin.f32 %v2285, 6.0
        %v2318 = vmin.f32 %v2286, 6.0
        %v2319 = vmin.f32 %v2287, 6.0
        %v2320 = vmin.f32 %v2288, 6.0
        %v2321 = vmin.f32 %v2289, 6.0
        %v2322 = vmin.f32 %v2290, 6.0
        %v2323 = vmin.f32 %v2291, 6.0
        %v2324 = vmin.f32 %v2292, 6.0
        %v2325 = vmin.f32 %v2293, 6.0
        %v2326 = vmin.f32 %v2294, 6.0
        %v2327 = vmin.f32 %v2295, 6.0
        %v2328 = vmin.f32 %v2296, 6.0
        %v2329 = vmin.f32 %v2297, 6.0
        %v2330 = vmin.f32 %v2298, 6.0
        %v2331 = vmin.f32 %v2299, 6.0
        %v2332 = vmin.f32 %v2300, 6.0
        %v2333 = vmin.f32 %v2301, 6.0
        %v2334 = vmin.f32 %v2302, 6.0
        %vm2335 = vcmask 64512
        %2336 = vst.msk [vmem:[%s190] sm:$0xff] %vm2335, %v2303
        %2337 = vst.msk [vmem:[%s190 + $0x8] sm:$0xff] %vm2335, %v2304
        %2338 = vst.msk [vmem:[%s190 + $0x10] sm:$0xff] %vm2335, %v2305
        %2339 = vst.msk [vmem:[%s190 + $0x18] sm:$0xff] %vm2335, %v2306
        %2340 = vst.msk [vmem:[%s190 + $0x20] sm:$0xff] %vm2335, %v2307
        %2341 = vst.msk [vmem:[%s190 + $0x28] sm:$0xff] %vm2335, %v2308
        %2342 = vst.msk [vmem:[%s190 + $0x30] sm:$0xff] %vm2335, %v2309
        %2343 = vst.msk [vmem:[%s190 + $0x38] sm:$0xff] %vm2335, %v2310
        %2344 = vst.msk [vmem:[%s190 + $0x40] sm:$0xff] %vm2335, %v2311
        %2345 = vst.msk [vmem:[%s190 + $0x48] sm:$0xff] %vm2335, %v2312
        %2346 = vst.msk [vmem:[%s190 + $0x50] sm:$0xff] %vm2335, %v2313
        %2347 = vst.msk [vmem:[%s190 + $0x58] sm:$0xff] %vm2335, %v2314
        %2348 = vst.msk [vmem:[%s190 + $0x60] sm:$0xff] %vm2335, %v2315
        %2349 = vst.msk [vmem:[%s190 + $0x68] sm:$0xff] %vm2335, %v2316
        %2350 = vst.msk [vmem:[%s190 + $0x70] sm:$0xff] %vm2335, %v2317
        %2351 = vst.msk [vmem:[%s190 + $0x78] sm:$0xff] %vm2335, %v2318
        %2352 = vst.msk [vmem:[%s190 + $0x80] sm:$0xff] %vm2335, %v2319
        %2353 = vst.msk [vmem:[%s190 + $0x88] sm:$0xff] %vm2335, %v2320
        %2354 = vst.msk [vmem:[%s190 + $0x90] sm:$0xff] %vm2335, %v2321
        %2355 = vst.msk [vmem:[%s190 + $0x98] sm:$0xff] %vm2335, %v2322
        %2356 = vst.msk [vmem:[%s190 + $0xa0] sm:$0xff] %vm2335, %v2323
        %2357 = vst.msk [vmem:[%s190 + $0xa8] sm:$0xff] %vm2335, %v2324
        %2358 = vst.msk [vmem:[%s190 + $0xb0] sm:$0xff] %vm2335, %v2325
        %2359 = vst.msk [vmem:[%s190 + $0xb8] sm:$0xff] %vm2335, %v2326
        %2360 = vst.msk [vmem:[%s190 + $0xc0] sm:$0xff] %vm2335, %v2327
        %2361 = vst.msk [vmem:[%s190 + $0xc8] sm:$0xff] %vm2335, %v2328
        %2362 = vst.msk [vmem:[%s190 + $0xd0] sm:$0xff] %vm2335, %v2329
        %2363 = vst.msk [vmem:[%s190 + $0xd8] sm:$0xff] %vm2335, %v2330
        %2364 = vst.msk [vmem:[%s190 + $0xe0] sm:$0xff] %vm2335, %v2331
        %2365 = vst.msk [vmem:[%s190 + $0xe8] sm:$0xff] %vm2335, %v2332
        %2366 = vst.msk [vmem:[%s190 + $0xf0] sm:$0xff] %vm2335, %v2333
        %2367 = vst.msk [vmem:[%s190 + $0xf8] sm:$0xff] %vm2335, %v2334
        %p2368 = scmp.lt.s32.totalorder %s17, 1
        %s2369 = scalar_select %p2368, %s17, 1
        %s2370 = smul.addr %s2369, 32
        %s2371 = smul.addr %s2370, 8
        %s2372 = scalar_lea.vmem %s3, %s2371
        // Predicated region
        $region37: #{tpu_custom_call.1} parent=31 // pred_check
          %p2373 = pneg %p103
        $region38: #{tpu_custom_call.1} parent=31 // pred_check_branch
          %2375 = sbr.rel (%p2373) target = $region40
        $region39: #{tpu_custom_call.1} parent=31 // pred_region
          _
        $region40: #{tpu_custom_call.1} parent=31 // pred_fallthru
          _
      $region32: #{tpu_custom_call.1} parent=5 // pred_fallthru
        _
      %p2376 = scmp.le.s32.totalorder 2, %s12
      // Predicated region
      $region41: #{tpu_custom_call.1} parent=5 // pred_check
        %p2377 = pneg %p2376
      $region42: #{tpu_custom_call.1} parent=5 // pred_check_branch
        %2379 = sbr.rel (%p2377) target = $region44
      $region43: #{tpu_custom_call.1} parent=5 // pred_region
        %s2380 = ssub.s32 %s12, 2
        // Predicated region
        $region45: #{tpu_custom_call.1} parent=43 // pred_check
          %p2381 = pneg %p109
        $region46: #{tpu_custom_call.1} parent=43 // pred_check_branch
          %2383 = sbr.rel (%p2381) target = $region48
        $region47: #{tpu_custom_call.1} parent=43 // pred_region
          %p2384 = scmp.lt.s32.totalorder %s18, 1
          %s2385 = scalar_select %p2384, %s18, 1
          %s2386 = smul.addr %s2385, 32
          %s2387 = smul.addr %s2386, 8
          %s2388 = scalar_lea.vmem %s3, %s2387
        $region48: #{tpu_custom_call.1} parent=43 // pred_fallthru
          _
      $region44: #{tpu_custom_call.1} parent=5 // pred_fallthru
        _
    $region6: #{tpu_custom_call.1} parent=1 // loop_footer
      %s16 = sadd.s32 1, %s12
    $region7: #{tpu_custom_call.1} parent=1 // loop_footer_branch
      %11 = sbr.rel target = $region3
    $region8: #{tpu_custom_call.1} parent=1 // loop_exit
      _
    %2389 = vsyncpa [#allocation4], 1
    %s2390 = scalar_lea.sflag [#allocation4], 1
    %2391 = vsyncpa %s2390, 1

</llo_original>
